<compile_context>
chip_gen: v5e
topology: v5e:2x2
jax: 0.10.0
libtpu: 0.0.40
codegen_flags: <defaults>
</compile_context>

<pallas_src>
import functools
import math

import jax
import jax.numpy as jnp
from jax import lax
from jax.experimental import pallas as pl
from jax.experimental.pallas import tpu as pltpu


# ----------------------------- fused layer kernel -----------------------------

def _cross_attn_layer_kernel(*refs, n_head, d_k, d_v, eps, mxu_dtype,
                             has_mask, has_attn, approx_softmax):
    f32 = jnp.float32
    refs = list(refs)
    pos = 0
    enc_ref, dec_ref = refs[pos], refs[pos + 1]
    pos += 2
    mask_ref = None
    if has_mask:
        mask_ref = refs[pos]
        pos += 1
    (w_q_ref, w_kv_ref, w_fc_ref,
     ln1_g_ref, ln1_b_ref,
     w1_ref, b1_ref, w2_ref, b2_ref,
     ln2_g_ref, ln2_b_ref) = refs[pos:pos + 11]
    pos += 11
    out_ref = refs[pos]
    pos += 1
    attn_ref = None
    if has_attn:
        attn_ref = refs[pos]
        pos += 1
    kv_ref = refs[pos]  # persistent VMEM scratch holding the cached [K | V] projection

    def mm(a, b):
        # MXU matmul; bf16 (or f32) operands, always f32 accumulate.
        return jnp.dot(a.astype(mxu_dtype), b.astype(mxu_dtype),
                       preferred_element_type=f32)

    # ---- K/V projection: computed once per batch row, reused across all q tiles ----
    @pl.when(pl.program_id(1) == 0)
    def _():
        kv_ref[...] = mm(dec_ref[...], w_kv_ref[...]).astype(kv_ref.dtype)

    enc = enc_ref[...]                                    # [TQ, D] queries (+ residual)
    # w_qs already carries the 1/sqrt(d_k) scale (folded at prepare_params time).
    q_all = mm(enc, w_q_ref[...]).astype(mxu_dtype)       # [TQ, H*dk], cast once (not per head)
    kv_all = kv_ref[...]                                  # [Lk, H*dk + H*dv], mxu dtype

    if has_mask:
        mask_keep = mask_ref[...] != 0                    # [TQ, Lk]

    # ---- per-head attention; contexts accumulated straight into the fc projection ----
    x = enc.astype(f32)                                   # start the sum from the residual
    for h in range(n_head):                               # static unroll over heads
        qh = q_all[:, h * d_k:(h + 1) * d_k]                              # [TQ, dk]
        kh = kv_all[:, h * d_k:(h + 1) * d_k]                             # [Lk, dk]
        vh = kv_all[:, n_head * d_k + h * d_v:
                       n_head * d_k + (h + 1) * d_v]                      # [Lk, dv]

        # scores = q_scaled @ k^T, contracting last dims directly (no XLU transpose)
        s = lax.dot_general(qh, kh, dimension_numbers=(((1,), (1,)), ((), ())),
                            preferred_element_type=f32)                   # [TQ, Lk]
        if has_mask:
            s = jnp.where(mask_keep, s, -1e9)
        s = s - jnp.max(s, axis=-1, keepdims=True)
        e = jnp.exp(s)
        denom = jnp.sum(e, axis=-1, keepdims=True)
        if approx_softmax:
            attn_h = e * pl.reciprocal(denom, approx=True)
        else:
            attn_h = e / denom
        if has_attn:
            attn_ref[h, :, :] = attn_h.astype(attn_ref.dtype)

        ctx_h = mm(attn_h, vh)                                            # [TQ, dv]
        # fc slice is a cheap sublane (row) slice; accumulation replaces concat + reshuffle.
        x = x + mm(ctx_h, w_fc_ref[h * d_v:(h + 1) * d_v, :])             # [TQ, D]

    # ---- residual + LayerNorm1 (all elementwise math in f32) ----
    mu = jnp.mean(x, axis=-1, keepdims=True)
    var = jnp.mean(jnp.square(x - mu), axis=-1, keepdims=True)
    y = (x - mu) * lax.rsqrt(var + eps) * ln1_g_ref[...] + ln1_b_ref[...]

    # ---- position-wise FFN + residual + LayerNorm2 ----
    h1 = jnp.maximum(mm(y, w1_ref[...]) + b1_ref[...], 0.0)              # [TQ, d_inner]
    z = mm(h1, w2_ref[...]) + b2_ref[...] + y                            # h1 cast to bf16 in mm
    mu2 = jnp.mean(z, axis=-1, keepdims=True)
    var2 = jnp.mean(jnp.square(z - mu2), axis=-1, keepdims=True)
    o = (z - mu2) * lax.rsqrt(var2 + eps) * ln2_g_ref[...] + ln2_b_ref[...]
    out_ref[...] = o.astype(out_ref.dtype)


# ----------------------------- wrapper -----------------------------

def _pick_q_tile(length):
    if length <= 256:
        return length
    for cand in (256, 128, 64, 32, 16, 8):
        if length % cand == 0:
            return cand
    return length


def _nbytes(shape, dtype):
    return math.prod(shape) * jnp.dtype(dtype).itemsize


def prepare_params(params, d_k, mxu_dtype=jnp.bfloat16):
    """One-time parameter transform: fold 1/sqrt(d_k) into w_qs, fuse [w_ks | w_vs],
    pre-cast matmul weights to the MXU operand dtype. Biases / LayerNorm stay f32."""
    scale = 1.0 / math.sqrt(d_k)
    return {
        "w_qs": (params["w_qs"] * scale).astype(mxu_dtype),
        "w_kv": jnp.concatenate([params["w_ks"], params["w_vs"]], axis=1).astype(mxu_dtype),
        "fc": params["fc"].astype(mxu_dtype),
        "w1": params["w1"].astype(mxu_dtype),
        "w2": params["w2"].astype(mxu_dtype),
        "b1": params["b1"].astype(jnp.float32),
        "b2": params["b2"].astype(jnp.float32),
        "ln1_g": params["ln1_g"].astype(jnp.float32),
        "ln1_b": params["ln1_b"].astype(jnp.float32),
        "ln2_g": params["ln2_g"].astype(jnp.float32),
        "ln2_b": params["ln2_b"].astype(jnp.float32),
    }


def cross_attn_layer(enc_feat, dec_feat, prepared, n_head, d_k, d_v, *,
                     mask=None, q_tile=None, eps=1e-6, mxu_dtype=jnp.bfloat16,
                     return_attn=True, attn_dtype=jnp.float32, approx_softmax=False):
    """enc_feat (query): [B, Lq, D]; dec_feat (key/value): [B, Lk, D];
    prepared: output of prepare_params(); mask: optional [B, Lq, Lk] or [B, 1, Lk]
    (nonzero = keep, matching masked_fill(mask==0, -1e9)).

    Returns (output [B, Lq, D], attn [B, n_head, Lq, Lk]) if return_attn else output.
    """
    B, Lq, D = enc_feat.shape
    Lk = dec_feat.shape[1]
    d_inner = prepared["w1"].shape[1]

    tq = _pick_q_tile(Lq) if q_tile is None else q_tile
    assert Lq % tq == 0, "q_tile must divide Lq"
    assert tq == Lq or tq % 8 == 0, "q_tile must be a multiple of 8 unless == Lq"
    n_qt = Lq // tq

    has_mask = mask is not None
    kernel = functools.partial(
        _cross_attn_layer_kernel,
        n_head=n_head, d_k=d_k, d_v=d_v, eps=eps, mxu_dtype=mxu_dtype,
        has_mask=has_mask, has_attn=return_attn, approx_softmax=approx_softmax)

    in_specs = [
        pl.BlockSpec((None, tq, D), lambda b, i: (b, i, 0)),          # enc (query tile)
        pl.BlockSpec((None, Lk, D), lambda b, i: (b, 0, 0)),          # dec (full K/V rows)
    ]
    args = [enc_feat, dec_feat]
    if has_mask:
        mask = jnp.broadcast_to(mask.astype(jnp.float32), (B, Lq, Lk))
        in_specs.append(pl.BlockSpec((None, tq, Lk), lambda b, i: (b, i, 0)))
        args.append(mask)

    def const2(shape):
        return pl.BlockSpec(shape, lambda b, i: (0, 0))

    in_specs += [
        const2((D, n_head * d_k)),                 # w_qs (pre-scaled, bf16)
        const2((D, n_head * (d_k + d_v))),         # [w_ks | w_vs] fused
        const2((n_head * d_v, D)),                 # fc
        const2((1, D)), const2((1, D)),            # ln1 gamma / beta
        const2((D, d_inner)), const2((1, d_inner)),  # w1 / b1
        const2((d_inner, D)), const2((1, D)),        # w2 / b2
        const2((1, D)), const2((1, D)),            # ln2 gamma / beta
    ]
    args += [prepared["w_qs"], prepared["w_kv"], prepared["fc"],
             prepared["ln1_g"], prepared["ln1_b"],
             prepared["w1"], prepared["b1"], prepared["w2"], prepared["b2"],
             prepared["ln2_g"], prepared["ln2_b"]]

    out_dtype = enc_feat.dtype
    out_spec = pl.BlockSpec((None, tq, D), lambda b, i: (b, i, 0))
    if return_attn:
        out_shape = (jax.ShapeDtypeStruct((B, Lq, D), out_dtype),
                     jax.ShapeDtypeStruct((B, n_head, Lq, Lk), attn_dtype))
        out_specs = [out_spec,
                     pl.BlockSpec((None, n_head, tq, Lk), lambda b, i: (b, 0, i, 0))]
    else:
        out_shape = jax.ShapeDtypeStruct((B, Lq, D), out_dtype)
        out_specs = out_spec

    # Explicit scoped-VMEM budget: resident weights + (double-buffered) activation tiles.
    weight_bytes = sum(_nbytes(a.shape, a.dtype) for a in args[2 + int(has_mask):])
    act_bytes = (_nbytes((tq, D), enc_feat.dtype) + _nbytes((Lk, D), dec_feat.dtype)
                 + _nbytes((tq, D), out_dtype)
                 + (_nbytes((tq, Lk), jnp.float32) if has_mask else 0)
                 + (_nbytes((n_head, tq, Lk), attn_dtype) if return_attn else 0))
    kv_bytes = _nbytes((Lk, n_head * (d_k + d_v)), mxu_dtype)
    vmem_limit = int(min(max(2 * (weight_bytes + act_bytes) + kv_bytes + (4 << 20),
                             32 << 20), 128 << 20))

    return pl.pallas_call(
        kernel,
        grid=(B, n_qt),
        in_specs=in_specs,
        out_specs=out_specs,
        out_shape=out_shape,
        scratch_shapes=[pltpu.VMEM((Lk, n_head * (d_k + d_v)), mxu_dtype)],
        compiler_params=pltpu.CompilerParams(
            # batch axis shards across TensorCores; q-tile axis must stay "arbitrary"
            # so the per-batch KV projection cached in scratch at tile 0 remains valid.
            dimension_semantics=("parallel", "arbitrary"),
            vmem_limit_bytes=vmem_limit),
    )(*args)


# ----------------------------- parameter init (PyTorch-style, f32) -----------------------------

def init_params(key, d_model, d_inner, n_head, d_k, d_v):
    ks = jax.random.split(key, 8)

    def lin_w(k, fan_in, fan_out):
        bound = 1.0 / (fan_in ** 0.5)
        # stored already transposed: [in, out]  (PyTorch keeps [out, in])
        return jax.random.uniform(k, (fan_in, fan_out), jnp.float32, -bound, bound)

    def lin_b(k, fan_in, fan_out):
        bound = 1.0 / (fan_in ** 0.5)
        return jax.random.uniform(k, (1, fan_out), jnp.float32, -bound, bound)

    return {
        # MultiHeadAttention (all Linear without bias)
        "w_qs": lin_w(ks[0], d_model, n_head * d_k),
        "w_ks": lin_w(ks[1], d_model, n_head * d_k),
        "w_vs": lin_w(ks[2], d_model, n_head * d_v),
        "fc":   lin_w(ks[3], n_head * d_v, d_model),
        "ln1_g": jnp.ones((1, d_model), jnp.float32),
        "ln1_b": jnp.zeros((1, d_model), jnp.float32),
        # PositionwiseFeedForward (Linear with bias)
        "w1": lin_w(ks[4], d_model, d_inner),
        "b1": lin_b(ks[5], d_model, d_inner),
        "w2": lin_w(ks[6], d_inner, d_model),
        "b2": lin_b(ks[7], d_inner, d_model),
        "ln2_g": jnp.ones((1, d_model), jnp.float32),
        "ln2_b": jnp.zeros((1, d_model), jnp.float32),
    }


# ----------------------------- pure-JAX reference -----------------------------

def _reference(enc_feat, dec_feat, params, n_head, d_k, d_v, mask=None, eps=1e-6):
    prec = lax.Precision.HIGHEST
    B, Lq, D = enc_feat.shape
    Lk = dec_feat.shape[1]
    q = jnp.matmul(enc_feat, params["w_qs"], precision=prec).reshape(
        B, Lq, n_head, d_k).transpose(0, 2, 1, 3)
    k = jnp.matmul(dec_feat, params["w_ks"], precision=prec).reshape(
        B, Lk, n_head, d_k).transpose(0, 2, 1, 3)
    v = jnp.matmul(dec_feat, params["w_vs"], precision=prec).reshape(
        B, Lk, n_head, d_v).transpose(0, 2, 1, 3)
    s = jnp.einsum("bhqd,bhkd->bhqk", q / (d_k ** 0.5), k, precision=prec)
    if mask is not None:
        s = jnp.where(mask[:, None, :, :] != 0, s, -1e9)
    attn = jax.nn.softmax(s, axis=-1)
    ctx = jnp.einsum("bhqk,bhkd->bhqd", attn, v, precision=prec)
    ctx = ctx.transpose(0, 2, 1, 3).reshape(B, Lq, n_head * d_v)

    def ln(x, g, b):
        mu = x.mean(-1, keepdims=True)
        var = ((x - mu) ** 2).mean(-1, keepdims=True)
        return (x - mu) * lax.rsqrt(var + eps) * g + b

    y = ln(jnp.matmul(ctx, params["fc"], precision=prec) + enc_feat,
           params["ln1_g"], params["ln1_b"])
    h = jnp.maximum(jnp.matmul(y, params["w1"], precision=prec) + params["b1"], 0.0)
    z = ln(jnp.matmul(h, params["w2"], precision=prec) + params["b2"] + y,
           params["ln2_g"], params["ln2_b"])
    return z, attn


# ----------------------------- driver -----------------------------

if __name__ == "__main__":
    # Small but lane-dense shapes: D and Lk are multiples of 128 so the output stores are
    # unmasked full-vreg vst's (per the perf review) while staying tiny.
    d_model, d_inner, n_head, d_k, d_v = 128, 256, 4, 32, 32
    B, Lq, Lk = 2, 16, 128

    key = jax.random.PRNGKey(0)
    k_enc, k_dec, k_par, k_msk = jax.random.split(key, 4)

    enc_feat = jax.random.normal(k_enc, (B, Lq, d_model), jnp.float32)
    dec_feat = jax.random.normal(k_dec, (B, Lk, d_model), jnp.float32)
    params = init_params(k_par, d_model, d_inner, n_head, d_k, d_v)

    # --- run 1: default bf16-MXU path (f32 accumulate), no mask ---
    prep_bf16 = prepare_params(params, d_k, mxu_dtype=jnp.bfloat16)
    out, attn = cross_attn_layer(enc_feat, dec_feat, prep_bf16, n_head, d_k, d_v,
                                 mxu_dtype=jnp.bfloat16)
    jax.block_until_ready((out, attn))
    assert out.shape == (B, Lq, d_model) and attn.shape == (B, n_head, Lq, Lk)
    assert bool(jnp.all(jnp.isfinite(out))) and bool(jnp.all(jnp.isfinite(attn)))
    ref_out, ref_attn = _reference(enc_feat, dec_feat, params, n_head, d_k, d_v)
    # tolerance accommodates bf16 MXU operand rounding (accumulation stays f32)
    assert bool(jnp.allclose(out, ref_out, rtol=3e-2, atol=3e-2))
    assert bool(jnp.allclose(attn, ref_attn, rtol=3e-2, atol=3e-2))

    # --- run 2: f32-MXU path with a cross-attention mask ---
    mask = (jax.random.uniform(k_msk, (B, Lq, Lk)) > 0.4).astype(jnp.float32)
    prep_f32 = prepare_params(params, d_k, mxu_dtype=jnp.float32)
    out_m, attn_m = cross_attn_layer(enc_feat, dec_feat, prep_f32, n_head, d_k, d_v,
                                     mask=mask, mxu_dtype=jnp.float32)
    jax.block_until_ready((out_m, attn_m))
    ref_out_m, ref_attn_m = _reference(enc_feat, dec_feat, params, n_head, d_k, d_v, mask=mask)
    assert bool(jnp.allclose(out_m, ref_out_m, rtol=2e-2, atol=2e-2))
    assert bool(jnp.allclose(attn_m, ref_attn_m, rtol=2e-2, atol=2e-2))

    # --- run 3: attention-probability writeback disabled (frees HBM writeback + VMEM) ---
    out_only = cross_attn_layer(enc_feat, dec_feat, prep_bf16, n_head, d_k, d_v,
                                return_attn=False)
    jax.block_until_ready(out_only)
    assert out_only.shape == (B, Lq, d_model)
    assert bool(jnp.allclose(out_only, out, rtol=1e-5, atol=1e-5))

    print("KERNEL_OK")
</pallas_src>

<mosaic_0001>
module attributes {stable_mosaic.version = 11 : i64} {
  func.func @_cross_attn_layer_kernel(%arg0: i32, %arg1: i32, %arg2: memref<1x16x128xf32, #tpu.memory_space<vmem>>, %arg3: memref<1x128x128xf32, #tpu.memory_space<vmem>>, %arg4: memref<128x128xbf16, #tpu.memory_space<vmem>>, %arg5: memref<128x256xbf16, #tpu.memory_space<vmem>>, %arg6: memref<128x128xbf16, #tpu.memory_space<vmem>>, %arg7: memref<1x128xf32, #tpu.memory_space<vmem>>, %arg8: memref<1x128xf32, #tpu.memory_space<vmem>>, %arg9: memref<128x256xbf16, #tpu.memory_space<vmem>>, %arg10: memref<1x256xf32, #tpu.memory_space<vmem>>, %arg11: memref<256x128xbf16, #tpu.memory_space<vmem>>, %arg12: memref<1x128xf32, #tpu.memory_space<vmem>>, %arg13: memref<1x128xf32, #tpu.memory_space<vmem>>, %arg14: memref<1x128xf32, #tpu.memory_space<vmem>>, %arg15: memref<1x16x128xf32, #tpu.memory_space<vmem>>, %arg16: memref<1x4x16x128xf32, #tpu.memory_space<vmem>>, %arg17: memref<128x256xbf16, #tpu.memory_space<vmem>>) attributes {dimension_semantics = [#tpu.dimension_semantics<parallel>, #tpu.dimension_semantics<arbitrary>], iteration_bounds = array<i64: 2, 1>, scalar_prefetch = 0 : i64, scratch_operands = 1 : i64, tpu.core_type = #tpu.core_type<tc>, window_params = [{transform_indices = @transform_0, window_bounds = array<i64: 1, 16, 128>}, {transform_indices = @transform_1, window_bounds = array<i64: 1, 128, 128>}, {pipeline_mode = #tpu.pipeline_mode<synchronous>, transform_indices = @transform_2, window_bounds = array<i64: 128, 128>}, {pipeline_mode = #tpu.pipeline_mode<synchronous>, transform_indices = @transform_3, window_bounds = array<i64: 128, 256>}, {pipeline_mode = #tpu.pipeline_mode<synchronous>, transform_indices = @transform_4, window_bounds = array<i64: 128, 128>}, {pipeline_mode = #tpu.pipeline_mode<synchronous>, transform_indices = @transform_5, window_bounds = array<i64: 1, 128>}, {pipeline_mode = #tpu.pipeline_mode<synchronous>, transform_indices = @transform_6, window_bounds = array<i64: 1, 128>}, {pipeline_mode = #tpu.pipeline_mode<synchronous>, transform_indices = @transform_7, window_bounds = array<i64: 128, 256>}, {pipeline_mode = #tpu.pipeline_mode<synchronous>, transform_indices = @transform_8, window_bounds = array<i64: 1, 256>}, {pipeline_mode = #tpu.pipeline_mode<synchronous>, transform_indices = @transform_9, window_bounds = array<i64: 256, 128>}, {pipeline_mode = #tpu.pipeline_mode<synchronous>, transform_indices = @transform_10, window_bounds = array<i64: 1, 128>}, {pipeline_mode = #tpu.pipeline_mode<synchronous>, transform_indices = @transform_11, window_bounds = array<i64: 1, 128>}, {pipeline_mode = #tpu.pipeline_mode<synchronous>, transform_indices = @transform_12, window_bounds = array<i64: 1, 128>}, {transform_indices = @transform_13, window_bounds = array<i64: 1, 16, 128>}, {transform_indices = @transform_14, window_bounds = array<i64: 1, 4, 16, 128>}]} {
    %c0_i32 = arith.constant 0 : i32
    %0 = arith.cmpi eq, %arg1, %c0_i32 : i32
    %1 = arith.extui %0 : i1 to i32
    %c0_i32_0 = arith.constant 0 : i32
    %2 = arith.cmpi ne, %1, %c0_i32_0 : i32
    scf.if %2 {
      %c0_77 = arith.constant 0 : index
      %c0_78 = arith.constant 0 : index
      %c0_79 = arith.constant 0 : index
      %164 = vector.load %arg3[%c0_77, %c0_78, %c0_79] : memref<1x128x128xf32, #tpu.memory_space<vmem>>, vector<1x128x128xf32>
      %165 = vector.shape_cast %164 : vector<1x128x128xf32> to vector<128x128xf32>
      %c0_80 = arith.constant 0 : index
      %c0_81 = arith.constant 0 : index
      %166 = vector.load %arg5[%c0_80, %c0_81] : memref<128x256xbf16, #tpu.memory_space<vmem>>, vector<128x256xbf16>
      %167 = arith.truncf %165 : vector<128x128xf32> to vector<128x128xbf16>
      %cst_82 = arith.constant dense<0.000000e+00> : vector<128x256xf32>
      %168 = tpu.matmul %167, %166, %cst_82 {dimension_numbers = #tpu.dot_dimension_numbers<[1], [0], [0], [1], [0, 0, 1, 1], [], []>} : vector<128x128xbf16>, vector<128x256xbf16>, vector<128x256xf32> -> vector<128x256xf32>
      %169 = arith.truncf %168 : vector<128x256xf32> to vector<128x256xbf16>
      %c0_83 = arith.constant 0 : index
      %c0_84 = arith.constant 0 : index
      %170 = vector.load %arg17[%c0_83, %c0_84] : memref<128x256xbf16, #tpu.memory_space<vmem>>, vector<128x256xbf16>
      tpu.vector_store %arg17[%c0_83, %c0_84], %169 {strides = array<i32>} : memref<128x256xbf16, #tpu.memory_space<vmem>>, vector<128x256xbf16>,
    } else {
    }
    %c0 = arith.constant 0 : index
    %c0_1 = arith.constant 0 : index
    %c0_2 = arith.constant 0 : index
    %3 = vector.load %arg2[%c0, %c0_1, %c0_2] : memref<1x16x128xf32, #tpu.memory_space<vmem>>, vector<1x16x128xf32>
    %4 = vector.shape_cast %3 : vector<1x16x128xf32> to vector<16x128xf32>
    %c0_3 = arith.constant 0 : index
    %c0_4 = arith.constant 0 : index
    %5 = vector.load %arg4[%c0_3, %c0_4] : memref<128x128xbf16, #tpu.memory_space<vmem>>, vector<128x128xbf16>
    %6 = arith.truncf %4 : vector<16x128xf32> to vector<16x128xbf16>
    %cst = arith.constant dense<0.000000e+00> : vector<16x128xf32>
    %7 = tpu.matmul %6, %5, %cst {dimension_numbers = #tpu.dot_dimension_numbers<[1], [0], [0], [1], [0, 0, 1, 1], [], []>} : vector<16x128xbf16>, vector<128x128xbf16>, vector<16x128xf32> -> vector<16x128xf32>
    %8 = arith.truncf %7 : vector<16x128xf32> to vector<16x128xbf16>
    %c0_5 = arith.constant 0 : index
    %c0_6 = arith.constant 0 : index
    %9 = vector.load %arg17[%c0_5, %c0_6] : memref<128x256xbf16, #tpu.memory_space<vmem>>, vector<128x256xbf16>
    %10 = vector.extract_strided_slice %8 {offsets = [0, 0], sizes = [16, 32], strides = [1, 1]} : vector<16x128xbf16> to vector<16x32xbf16>
    %11 = vector.extract_strided_slice %9 {offsets = [0, 0], sizes = [128, 32], strides = [1, 1]} : vector<128x256xbf16> to vector<128x32xbf16>
    %12 = vector.extract_strided_slice %9 {offsets = [0, 128], sizes = [128, 32], strides = [1, 1]} : vector<128x256xbf16> to vector<128x32xbf16>
    %cst_7 = arith.constant dense<0.000000e+00> : vector<16x128xf32>
    %13 = tpu.matmul %10, %11, %cst_7 {dimension_numbers = #tpu.dot_dimension_numbers<[1], [1], [0], [0], [0, 0, 1, 0], [], []>} : vector<16x32xbf16>, vector<128x32xbf16>, vector<16x128xf32> -> vector<16x128xf32>
    %cst_8 = arith.constant dense<0xFF800000> : vector<16xf32>
    %14 = vector.multi_reduction <maximumf>, %13, %cst_8 [1] : vector<16x128xf32> to vector<16xf32>
    %15 = vector.shape_cast %14 : vector<16xf32> to vector<16x1xf32>
    %16 = vector.broadcast %15 : vector<16x1xf32> to vector<16x128xf32>
    %17 = arith.subf %13, %16 : vector<16x128xf32>
    %18 = math.exp %17 : vector<16x128xf32>
    %cst_9 = arith.constant dense<0.000000e+00> : vector<16xf32>
    %19 = vector.multi_reduction <add>, %18, %cst_9 [1] : vector<16x128xf32> to vector<16xf32>
    %20 = vector.shape_cast %19 : vector<16xf32> to vector<16x1xf32>
    %21 = vector.broadcast %20 : vector<16x1xf32> to vector<16x128xf32>
    %22 = arith.divf %18, %21 : vector<16x128xf32>
    %c0_10 = arith.constant 0 : index
    %c0_11 = arith.constant 0 : index
    %c0_12 = arith.constant 0 : index
    %c0_13 = arith.constant 0 : index
    %23 = vector.load %arg16[%c0_10, %c0_11, %c0_12, %c0_13] : memref<1x4x16x128xf32, #tpu.memory_space<vmem>>, vector<1x1x16x128xf32>
    %24 = vector.shape_cast %23 : vector<1x1x16x128xf32> to vector<16x128xf32>
    %25 = vector.shape_cast %22 : vector<16x128xf32> to vector<1x1x16x128xf32>
    tpu.vector_store %arg16[%c0_10, %c0_11, %c0_12, %c0_13], %25 {strides = array<i32>} : memref<1x4x16x128xf32, #tpu.memory_space<vmem>>, vector<1x1x16x128xf32>,
    %26 = arith.truncf %22 : vector<16x128xf32> to vector<16x128xbf16>
    %cst_14 = arith.constant dense<0.000000e+00> : vector<16x32xf32>
    %27 = tpu.matmul %26, %12, %cst_14 {dimension_numbers = #tpu.dot_dimension_numbers<[1], [0], [0], [1], [0, 0, 1, 1], [], []>} : vector<16x128xbf16>, vector<128x32xbf16>, vector<16x32xf32> -> vector<16x32xf32>
    %c0_15 = arith.constant 0 : index
    %c0_16 = arith.constant 0 : index
    %28 = vector.load %arg6[%c0_15, %c0_16] : memref<128x128xbf16, #tpu.memory_space<vmem>>, vector<32x128xbf16>
    %29 = arith.truncf %27 : vector<16x32xf32> to vector<16x32xbf16>
    %cst_17 = arith.constant dense<0.000000e+00> : vector<16x128xf32>
    %30 = tpu.matmul %29, %28, %cst_17 {dimension_numbers = #tpu.dot_dimension_numbers<[1], [0], [0], [1], [0, 0, 1, 1], [], []>} : vector<16x32xbf16>, vector<32x128xbf16>, vector<16x128xf32> -> vector<16x128xf32>
    %31 = arith.addf %4, %30 : vector<16x128xf32>
    %32 = vector.extract_strided_slice %8 {offsets = [0, 32], sizes = [16, 32], strides = [1, 1]} : vector<16x128xbf16> to vector<16x32xbf16>
    %33 = vector.extract_strided_slice %9 {offsets = [0, 32], sizes = [128, 32], strides = [1, 1]} : vector<128x256xbf16> to vector<128x32xbf16>
    %34 = vector.extract_strided_slice %9 {offsets = [0, 160], sizes = [128, 32], strides = [1, 1]} : vector<128x256xbf16> to vector<128x32xbf16>
    %cst_18 = arith.constant dense<0.000000e+00> : vector<16x128xf32>
    %35 = tpu.matmul %32, %33, %cst_18 {dimension_numbers = #tpu.dot_dimension_numbers<[1], [1], [0], [0], [0, 0, 1, 0], [], []>} : vector<16x32xbf16>, vector<128x32xbf16>, vector<16x128xf32> -> vector<16x128xf32>
    %cst_19 = arith.constant dense<0xFF800000> : vector<16xf32>
    %36 = vector.multi_reduction <maximumf>, %35, %cst_19 [1] : vector<16x128xf32> to vector<16xf32>
    %37 = vector.shape_cast %36 : vector<16xf32> to vector<16x1xf32>
    %38 = vector.broadcast %37 : vector<16x1xf32> to vector<16x128xf32>
    %39 = arith.subf %35, %38 : vector<16x128xf32>
    %40 = math.exp %39 : vector<16x128xf32>
    %cst_20 = arith.constant dense<0.000000e+00> : vector<16xf32>
    %41 = vector.multi_reduction <add>, %40, %cst_20 [1] : vector<16x128xf32> to vector<16xf32>
    %42 = vector.shape_cast %41 : vector<16xf32> to vector<16x1xf32>
    %43 = vector.broadcast %42 : vector<16x1xf32> to vector<16x128xf32>
    %44 = arith.divf %40, %43 : vector<16x128xf32>
    %c0_21 = arith.constant 0 : index
    %c1 = arith.constant 1 : index
    %c0_22 = arith.constant 0 : index
    %c0_23 = arith.constant 0 : index
    %45 = vector.load %arg16[%c0_21, %c1, %c0_22, %c0_23] : memref<1x4x16x128xf32, #tpu.memory_space<vmem>>, vector<1x1x16x128xf32>
    %46 = vector.shape_cast %45 : vector<1x1x16x128xf32> to vector<16x128xf32>
    %47 = vector.shape_cast %44 : vector<16x128xf32> to vector<1x1x16x128xf32>
    tpu.vector_store %arg16[%c0_21, %c1, %c0_22, %c0_23], %47 {strides = array<i32>} : memref<1x4x16x128xf32, #tpu.memory_space<vmem>>, vector<1x1x16x128xf32>,
    %48 = arith.truncf %44 : vector<16x128xf32> to vector<16x128xbf16>
    %cst_24 = arith.constant dense<0.000000e+00> : vector<16x32xf32>
    %49 = tpu.matmul %48, %34, %cst_24 {dimension_numbers = #tpu.dot_dimension_numbers<[1], [0], [0], [1], [0, 0, 1, 1], [], []>} : vector<16x128xbf16>, vector<128x32xbf16>, vector<16x32xf32> -> vector<16x32xf32>
    %c32 = arith.constant 32 : index
    %c0_25 = arith.constant 0 : index
    %50 = vector.load %arg6[%c32, %c0_25] : memref<128x128xbf16, #tpu.memory_space<vmem>>, vector<32x128xbf16>
    %51 = arith.truncf %49 : vector<16x32xf32> to vector<16x32xbf16>
    %cst_26 = arith.constant dense<0.000000e+00> : vector<16x128xf32>
    %52 = tpu.matmul %51, %50, %cst_26 {dimension_numbers = #tpu.dot_dimension_numbers<[1], [0], [0], [1], [0, 0, 1, 1], [], []>} : vector<16x32xbf16>, vector<32x128xbf16>, vector<16x128xf32> -> vector<16x128xf32>
    %53 = arith.addf %31, %52 : vector<16x128xf32>
    %54 = vector.extract_strided_slice %8 {offsets = [0, 64], sizes = [16, 32], strides = [1, 1]} : vector<16x128xbf16> to vector<16x32xbf16>
    %55 = vector.extract_strided_slice %9 {offsets = [0, 64], sizes = [128, 32], strides = [1, 1]} : vector<128x256xbf16> to vector<128x32xbf16>
    %56 = vector.extract_strided_slice %9 {offsets = [0, 192], sizes = [128, 32], strides = [1, 1]} : vector<128x256xbf16> to vector<128x32xbf16>
    %cst_27 = arith.constant dense<0.000000e+00> : vector<16x128xf32>
    %57 = tpu.matmul %54, %55, %cst_27 {dimension_numbers = #tpu.dot_dimension_numbers<[1], [1], [0], [0], [0, 0, 1, 0], [], []>} : vector<16x32xbf16>, vector<128x32xbf16>, vector<16x128xf32> -> vector<16x128xf32>
    %cst_28 = arith.constant dense<0xFF800000> : vector<16xf32>
    %58 = vector.multi_reduction <maximumf>, %57, %cst_28 [1] : vector<16x128xf32> to vector<16xf32>
    %59 = vector.shape_cast %58 : vector<16xf32> to vector<16x1xf32>
    %60 = vector.broadcast %59 : vector<16x1xf32> to vector<16x128xf32>
    %61 = arith.subf %57, %60 : vector<16x128xf32>
    %62 = math.exp %61 : vector<16x128xf32>
    %cst_29 = arith.constant dense<0.000000e+00> : vector<16xf32>
    %63 = vector.multi_reduction <add>, %62, %cst_29 [1] : vector<16x128xf32> to vector<16xf32>
    %64 = vector.shape_cast %63 : vector<16xf32> to vector<16x1xf32>
    %65 = vector.broadcast %64 : vector<16x1xf32> to vector<16x128xf32>
    %66 = arith.divf %62, %65 : vector<16x128xf32>
    %c0_30 = arith.constant 0 : index
    %c2 = arith.constant 2 : index
    %c0_31 = arith.constant 0 : index
    %c0_32 = arith.constant 0 : index
    %67 = vector.load %arg16[%c0_30, %c2, %c0_31, %c0_32] : memref<1x4x16x128xf32, #tpu.memory_space<vmem>>, vector<1x1x16x128xf32>
    %68 = vector.shape_cast %67 : vector<1x1x16x128xf32> to vector<16x128xf32>
    %69 = vector.shape_cast %66 : vector<16x128xf32> to vector<1x1x16x128xf32>
    tpu.vector_store %arg16[%c0_30, %c2, %c0_31, %c0_32], %69 {strides = array<i32>} : memref<1x4x16x128xf32, #tpu.memory_space<vmem>>, vector<1x1x16x128xf32>,
    %70 = arith.truncf %66 : vector<16x128xf32> to vector<16x128xbf16>
    %cst_33 = arith.constant dense<0.000000e+00> : vector<16x32xf32>
    %71 = tpu.matmul %70, %56, %cst_33 {dimension_numbers = #tpu.dot_dimension_numbers<[1], [0], [0], [1], [0, 0, 1, 1], [], []>} : vector<16x128xbf16>, vector<128x32xbf16>, vector<16x32xf32> -> vector<16x32xf32>
    %c64 = arith.constant 64 : index
    %c0_34 = arith.constant 0 : index
    %72 = vector.load %arg6[%c64, %c0_34] : memref<128x128xbf16, #tpu.memory_space<vmem>>, vector<32x128xbf16>
    %73 = arith.truncf %71 : vector<16x32xf32> to vector<16x32xbf16>
    %cst_35 = arith.constant dense<0.000000e+00> : vector<16x128xf32>
    %74 = tpu.matmul %73, %72, %cst_35 {dimension_numbers = #tpu.dot_dimension_numbers<[1], [0], [0], [1], [0, 0, 1, 1], [], []>} : vector<16x32xbf16>, vector<32x128xbf16>, vector<16x128xf32> -> vector<16x128xf32>
    %75 = arith.addf %53, %74 : vector<16x128xf32>
    %76 = vector.extract_strided_slice %8 {offsets = [0, 96], sizes = [16, 32], strides = [1, 1]} : vector<16x128xbf16> to vector<16x32xbf16>
    %77 = vector.extract_strided_slice %9 {offsets = [0, 96], sizes = [128, 32], strides = [1, 1]} : vector<128x256xbf16> to vector<128x32xbf16>
    %78 = vector.extract_strided_slice %9 {offsets = [0, 224], sizes = [128, 32], strides = [1, 1]} : vector<128x256xbf16> to vector<128x32xbf16>
    %cst_36 = arith.constant dense<0.000000e+00> : vector<16x128xf32>
    %79 = tpu.matmul %76, %77, %cst_36 {dimension_numbers = #tpu.dot_dimension_numbers<[1], [1], [0], [0], [0, 0, 1, 0], [], []>} : vector<16x32xbf16>, vector<128x32xbf16>, vector<16x128xf32> -> vector<16x128xf32>
    %cst_37 = arith.constant dense<0xFF800000> : vector<16xf32>
    %80 = vector.multi_reduction <maximumf>, %79, %cst_37 [1] : vector<16x128xf32> to vector<16xf32>
    %81 = vector.shape_cast %80 : vector<16xf32> to vector<16x1xf32>
    %82 = vector.broadcast %81 : vector<16x1xf32> to vector<16x128xf32>
    %83 = arith.subf %79, %82 : vector<16x128xf32>
    %84 = math.exp %83 : vector<16x128xf32>
    %cst_38 = arith.constant dense<0.000000e+00> : vector<16xf32>
    %85 = vector.multi_reduction <add>, %84, %cst_38 [1] : vector<16x128xf32> to vector<16xf32>
    %86 = vector.shape_cast %85 : vector<16xf32> to vector<16x1xf32>
    %87 = vector.broadcast %86 : vector<16x1xf32> to vector<16x128xf32>
    %88 = arith.divf %84, %87 : vector<16x128xf32>
    %c0_39 = arith.constant 0 : index
    %c3 = arith.constant 3 : index
    %c0_40 = arith.constant 0 : index
    %c0_41 = arith.constant 0 : index
    %89 = vector.load %arg16[%c0_39, %c3, %c0_40, %c0_41] : memref<1x4x16x128xf32, #tpu.memory_space<vmem>>, vector<1x1x16x128xf32>
    %90 = vector.shape_cast %89 : vector<1x1x16x128xf32> to vector<16x128xf32>
    %91 = vector.shape_cast %88 : vector<16x128xf32> to vector<1x1x16x128xf32>
    tpu.vector_store %arg16[%c0_39, %c3, %c0_40, %c0_41], %91 {strides = array<i32>} : memref<1x4x16x128xf32, #tpu.memory_space<vmem>>, vector<1x1x16x128xf32>,
    %92 = arith.truncf %88 : vector<16x128xf32> to vector<16x128xbf16>
    %cst_42 = arith.constant dense<0.000000e+00> : vector<16x32xf32>
    %93 = tpu.matmul %92, %78, %cst_42 {dimension_numbers = #tpu.dot_dimension_numbers<[1], [0], [0], [1], [0, 0, 1, 1], [], []>} : vector<16x128xbf16>, vector<128x32xbf16>, vector<16x32xf32> -> vector<16x32xf32>
    %c96 = arith.constant 96 : index
    %c0_43 = arith.constant 0 : index
    %94 = vector.load %arg6[%c96, %c0_43] : memref<128x128xbf16, #tpu.memory_space<vmem>>, vector<32x128xbf16>
    %95 = arith.truncf %93 : vector<16x32xf32> to vector<16x32xbf16>
    %cst_44 = arith.constant dense<0.000000e+00> : vector<16x128xf32>
    %96 = tpu.matmul %95, %94, %cst_44 {dimension_numbers = #tpu.dot_dimension_numbers<[1], [0], [0], [1], [0, 0, 1, 1], [], []>} : vector<16x32xbf16>, vector<32x128xbf16>, vector<16x128xf32> -> vector<16x128xf32>
    %97 = arith.addf %75, %96 : vector<16x128xf32>
    %cst_45 = arith.constant dense<0.000000e+00> : vector<16xf32>
    %98 = vector.multi_reduction <add>, %97, %cst_45 [1] : vector<16x128xf32> to vector<16xf32>
    %99 = vector.shape_cast %98 : vector<16xf32> to vector<16x1xf32>
    %cst_46 = arith.constant 1.280000e+02 : f32
    %100 = vector.broadcast %cst_46 : f32 to vector<16x1xf32>
    %101 = arith.divf %99, %100 : vector<16x1xf32>
    %102 = vector.broadcast %101 : vector<16x1xf32> to vector<16x128xf32>
    %103 = arith.subf %97, %102 : vector<16x128xf32>
    %104 = arith.mulf %103, %103 : vector<16x128xf32>
    %cst_47 = arith.constant dense<0.000000e+00> : vector<16xf32>
    %105 = vector.multi_reduction <add>, %104, %cst_47 [1] : vector<16x128xf32> to vector<16xf32>
    %106 = vector.shape_cast %105 : vector<16xf32> to vector<16x1xf32>
    %cst_48 = arith.constant 1.280000e+02 : f32
    %107 = vector.broadcast %cst_48 : f32 to vector<16x1xf32>
    %108 = arith.divf %106, %107 : vector<16x1xf32>
    %109 = vector.broadcast %101 : vector<16x1xf32> to vector<16x128xf32>
    %110 = arith.subf %97, %109 : vector<16x128xf32>
    %cst_49 = arith.constant 9.99999997E-7 : f32
    %111 = vector.broadcast %cst_49 : f32 to vector<16x1xf32>
    %112 = arith.addf %108, %111 : vector<16x1xf32>
    %113 = math.rsqrt %112 : vector<16x1xf32>
    %114 = vector.broadcast %113 : vector<16x1xf32> to vector<16x128xf32>
    %115 = arith.mulf %110, %114 : vector<16x128xf32>
    %c0_50 = arith.constant 0 : index
    %c0_51 = arith.constant 0 : index
    %116 = vector.load %arg7[%c0_50, %c0_51] : memref<1x128xf32, #tpu.memory_space<vmem>>, vector<1x128xf32>
    %117 = vector.broadcast %116 : vector<1x128xf32> to vector<16x128xf32>
    %118 = arith.mulf %115, %117 : vector<16x128xf32>
    %c0_52 = arith.constant 0 : index
    %c0_53 = arith.constant 0 : index
    %119 = vector.load %arg8[%c0_52, %c0_53] : memref<1x128xf32, #tpu.memory_space<vmem>>, vector<1x128xf32>
    %120 = vector.broadcast %119 : vector<1x128xf32> to vector<16x128xf32>
    %121 = arith.addf %118, %120 : vector<16x128xf32>
    %c0_54 = arith.constant 0 : index
    %c0_55 = arith.constant 0 : index
    %122 = vector.load %arg9[%c0_54, %c0_55] : memref<128x256xbf16, #tpu.memory_space<vmem>>, vector<128x256xbf16>
    %123 = arith.truncf %121 : vector<16x128xf32> to vector<16x128xbf16>
    %cst_56 = arith.constant dense<0.000000e+00> : vector<16x256xf32>
    %124 = tpu.matmul %123, %122, %cst_56 {dimension_numbers = #tpu.dot_dimension_numbers<[1], [0], [0], [1], [0, 0, 1, 1], [], []>} : vector<16x128xbf16>, vector<128x256xbf16>, vector<16x256xf32> -> vector<16x256xf32>
    %c0_57 = arith.constant 0 : index
    %c0_58 = arith.constant 0 : index
    %125 = vector.load %arg10[%c0_57, %c0_58] : memref<1x256xf32, #tpu.memory_space<vmem>>, vector<1x256xf32>
    %126 = vector.broadcast %125 : vector<1x256xf32> to vector<16x256xf32>
    %127 = arith.addf %124, %126 : vector<16x256xf32>
    %cst_59 = arith.constant 0.000000e+00 : f32
    %128 = vector.broadcast %cst_59 : f32 to vector<16x256xf32>
    %129 = arith.maximumf %127, %128 : vector<16x256xf32>
    %c0_60 = arith.constant 0 : index
    %c0_61 = arith.constant 0 : index
    %130 = vector.load %arg11[%c0_60, %c0_61] : memref<256x128xbf16, #tpu.memory_space<vmem>>, vector<256x128xbf16>
    %131 = arith.truncf %129 : vector<16x256xf32> to vector<16x256xbf16>
    %cst_62 = arith.constant dense<0.000000e+00> : vector<16x128xf32>
    %132 = tpu.matmul %131, %130, %cst_62 {dimension_numbers = #tpu.dot_dimension_numbers<[1], [0], [0], [1], [0, 0, 1, 1], [], []>} : vector<16x256xbf16>, vector<256x128xbf16>, vector<16x128xf32> -> vector<16x128xf32>
    %c0_63 = arith.constant 0 : index
    %c0_64 = arith.constant 0 : index
    %133 = vector.load %arg12[%c0_63, %c0_64] : memref<1x128xf32, #tpu.memory_space<vmem>>, vector<1x128xf32>
    %134 = vector.broadcast %133 : vector<1x128xf32> to vector<16x128xf32>
    %135 = arith.addf %132, %134 : vector<16x128xf32>
    %136 = arith.addf %135, %121 : vector<16x128xf32>
    %cst_65 = arith.constant dense<0.000000e+00> : vector<16xf32>
    %137 = vector.multi_reduction <add>, %136, %cst_65 [1] : vector<16x128xf32> to vector<16xf32>
    %138 = vector.shape_cast %137 : vector<16xf32> to vector<16x1xf32>
    %cst_66 = arith.constant 1.280000e+02 : f32
    %139 = vector.broadcast %cst_66 : f32 to vector<16x1xf32>
    %140 = arith.divf %138, %139 : vector<16x1xf32>
    %141 = vector.broadcast %140 : vector<16x1xf32> to vector<16x128xf32>
    %142 = arith.subf %136, %141 : vector<16x128xf32>
    %143 = arith.mulf %142, %142 : vector<16x128xf32>
    %cst_67 = arith.constant dense<0.000000e+00> : vector<16xf32>
    %144 = vector.multi_reduction <add>, %143, %cst_67 [1] : vector<16x128xf32> to vector<16xf32>
    %145 = vector.shape_cast %144 : vector<16xf32> to vector<16x1xf32>
    %cst_68 = arith.constant 1.280000e+02 : f32
    %146 = vector.broadcast %cst_68 : f32 to vector<16x1xf32>
    %147 = arith.divf %145, %146 : vector<16x1xf32>
    %148 = vector.broadcast %140 : vector<16x1xf32> to vector<16x128xf32>
    %149 = arith.subf %136, %148 : vector<16x128xf32>
    %cst_69 = arith.constant 9.99999997E-7 : f32
    %150 = vector.broadcast %cst_69 : f32 to vector<16x1xf32>
    %151 = arith.addf %147, %150 : vector<16x1xf32>
    %152 = math.rsqrt %151 : vector<16x1xf32>
    %153 = vector.broadcast %152 : vector<16x1xf32> to vector<16x128xf32>
    %154 = arith.mulf %149, %153 : vector<16x128xf32>
    %c0_70 = arith.constant 0 : index
    %c0_71 = arith.constant 0 : index
    %155 = vector.load %arg13[%c0_70, %c0_71] : memref<1x128xf32, #tpu.memory_space<vmem>>, vector<1x128xf32>
    %156 = vector.broadcast %155 : vector<1x128xf32> to vector<16x128xf32>
    %157 = arith.mulf %154, %156 : vector<16x128xf32>
    %c0_72 = arith.constant 0 : index
    %c0_73 = arith.constant 0 : index
    %158 = vector.load %arg14[%c0_72, %c0_73] : memref<1x128xf32, #tpu.memory_space<vmem>>, vector<1x128xf32>
    %159 = vector.broadcast %158 : vector<1x128xf32> to vector<16x128xf32>
    %160 = arith.addf %157, %159 : vector<16x128xf32>
    %c0_74 = arith.constant 0 : index
    %c0_75 = arith.constant 0 : index
    %c0_76 = arith.constant 0 : index
    %161 = vector.load %arg15[%c0_74, %c0_75, %c0_76] : memref<1x16x128xf32, #tpu.memory_space<vmem>>, vector<1x16x128xf32>
    %162 = vector.shape_cast %161 : vector<1x16x128xf32> to vector<16x128xf32>
    %163 = vector.shape_cast %160 : vector<16x128xf32> to vector<1x16x128xf32>
    tpu.vector_store %arg15[%c0_74, %c0_75, %c0_76], %163 {strides = array<i32>} : memref<1x16x128xf32, #tpu.memory_space<vmem>>, vector<1x16x128xf32>,
    return
  }
  func.func @transform_0(%arg0: i32, %arg1: i32) -> (i32, i32, i32) {
    %c0_i32 = arith.constant 0 : i32
    %c0_i32_0 = arith.constant 0 : i32
    return %arg0, %arg1, %c0_i32 : i32, i32, i32
  }
  func.func @transform_1(%arg0: i32, %arg1: i32) -> (i32, i32, i32) {
    %c0_i32 = arith.constant 0 : i32
    %c0_i32_0 = arith.constant 0 : i32
    %c0_i32_1 = arith.constant 0 : i32
    return %arg0, %c0_i32, %c0_i32_0 : i32, i32, i32
  }
  func.func @transform_2(%arg0: i32, %arg1: i32) -> (i32, i32) {
    %c0_i32 = arith.constant 0 : i32
    %c0_i32_0 = arith.constant 0 : i32
    %c0_i32_1 = arith.constant 0 : i32
    return %c0_i32, %c0_i32_0 : i32, i32
  }
  func.func @transform_3(%arg0: i32, %arg1: i32) -> (i32, i32) {
    %c0_i32 = arith.constant 0 : i32
    %c0_i32_0 = arith.constant 0 : i32
    %c0_i32_1 = arith.constant 0 : i32
    return %c0_i32, %c0_i32_0 : i32, i32
  }
  func.func @transform_4(%arg0: i32, %arg1: i32) -> (i32, i32) {
    %c0_i32 = arith.constant 0 : i32
    %c0_i32_0 = arith.constant 0 : i32
    %c0_i32_1 = arith.constant 0 : i32
    return %c0_i32, %c0_i32_0 : i32, i32
  }
  func.func @transform_5(%arg0: i32, %arg1: i32) -> (i32, i32) {
    %c0_i32 = arith.constant 0 : i32
    %c0_i32_0 = arith.constant 0 : i32
    %c0_i32_1 = arith.constant 0 : i32
    return %c0_i32, %c0_i32_0 : i32, i32
  }
  func.func @transform_6(%arg0: i32, %arg1: i32) -> (i32, i32) {
    %c0_i32 = arith.constant 0 : i32
    %c0_i32_0 = arith.constant 0 : i32
    %c0_i32_1 = arith.constant 0 : i32
    return %c0_i32, %c0_i32_0 : i32, i32
  }
  func.func @transform_7(%arg0: i32, %arg1: i32) -> (i32, i32) {
    %c0_i32 = arith.constant 0 : i32
    %c0_i32_0 = arith.constant 0 : i32
    %c0_i32_1 = arith.constant 0 : i32
    return %c0_i32, %c0_i32_0 : i32, i32
  }
  func.func @transform_8(%arg0: i32, %arg1: i32) -> (i32, i32) {
    %c0_i32 = arith.constant 0 : i32
    %c0_i32_0 = arith.constant 0 : i32
    %c0_i32_1 = arith.constant 0 : i32
    return %c0_i32, %c0_i32_0 : i32, i32
  }
  func.func @transform_9(%arg0: i32, %arg1: i32) -> (i32, i32) {
    %c0_i32 = arith.constant 0 : i32
    %c0_i32_0 = arith.constant 0 : i32
    %c0_i32_1 = arith.constant 0 : i32
    return %c0_i32, %c0_i32_0 : i32, i32
  }
  func.func @transform_10(%arg0: i32, %arg1: i32) -> (i32, i32) {
    %c0_i32 = arith.constant 0 : i32
    %c0_i32_0 = arith.constant 0 : i32
    %c0_i32_1 = arith.constant 0 : i32
    return %c0_i32, %c0_i32_0 : i32, i32
  }
  func.func @transform_11(%arg0: i32, %arg1: i32) -> (i32, i32) {
    %c0_i32 = arith.constant 0 : i32
    %c0_i32_0 = arith.constant 0 : i32
    %c0_i32_1 = arith.constant 0 : i32
    return %c0_i32, %c0_i32_0 : i32, i32
  }
  func.func @transform_12(%arg0: i32, %arg1: i32) -> (i32, i32) {
    %c0_i32 = arith.constant 0 : i32
    %c0_i32_0 = arith.constant 0 : i32
    %c0_i32_1 = arith.constant 0 : i32
    return %c0_i32, %c0_i32_0 : i32, i32
  }
  func.func @transform_13(%arg0: i32, %arg1: i32) -> (i32, i32, i32) {
    %c0_i32 = arith.constant 0 : i32
    %c0_i32_0 = arith.constant 0 : i32
    return %arg0, %arg1, %c0_i32 : i32, i32, i32
  }
  func.func @transform_14(%arg0: i32, %arg1: i32) -> (i32, i32, i32, i32) {
    %c0_i32 = arith.constant 0 : i32
    %c0_i32_0 = arith.constant 0 : i32
    %c0_i32_1 = arith.constant 0 : i32
    return %arg0, %c0_i32, %arg1, %c0_i32_0 : i32, i32, i32, i32
  }
}

</mosaic_0001>

<llo_original>
// kernel: tpu_custom_call.1
$region0: #{tpu_custom_call.1}
  #allocation0 [shape = 'u32[]', space=smem, size = 0x4, offset = 0x4, fixed_abs, tag = 'smem constant byte address 0x4 - core index']
  #allocation1 [shape = 'u32[72,128]{1,0:T(1,128)}', space=vmem, size = 0x9000, scoped, tag = 'internal scratch']
  #allocation2 [shape = 'bf16[128,256]{1,0:T(8,128)(2,1)}', space=vmem, size = 0x10000, scoped, tag = 'scratch operand']
  %s0 = inlined_call_operand.hbm [shape: f32[2,16,128], index: 0, kind: input, shape index: {}]
  %s1 = inlined_call_operand.hbm [shape: f32[2,128,128], index: 1, kind: input, shape index: {}]
  %s2 = inlined_call_operand.hbm [shape: bf16[128,128], index: 2, kind: input, shape index: {}]
  %s3 = inlined_call_operand.hbm [shape: bf16[128,256], index: 3, kind: input, shape index: {}]
  %s4 = inlined_call_operand.hbm [shape: bf16[128,128], index: 4, kind: input, shape index: {}]
  %s5 = inlined_call_operand.vmem [shape: f32[1,128], index: 5, kind: input, shape index: {}]
  %s6 = inlined_call_operand.vmem [shape: f32[1,128], index: 6, kind: input, shape index: {}]
  %s7 = inlined_call_operand.hbm [shape: bf16[128,256], index: 7, kind: input, shape index: {}]
  %s8 = inlined_call_operand.vmem [shape: f32[1,256], index: 8, kind: input, shape index: {}]
  %s9 = inlined_call_operand.hbm [shape: bf16[256,128], index: 9, kind: input, shape index: {}]
  %s10 = inlined_call_operand.vmem [shape: f32[1,128], index: 10, kind: input, shape index: {}]
  %s11 = inlined_call_operand.vmem [shape: f32[1,128], index: 11, kind: input, shape index: {}]
  %s12 = inlined_call_operand.vmem [shape: f32[1,128], index: 12, kind: input, shape index: {}]
  %s13 = inlined_call_operand.hbm [shape: f32[2,16,128], index: 13, kind: output, shape index: {0}]
  %s14 = inlined_call_operand.hbm [shape: f32[2,4,16,128], index: 14, kind: output, shape index: {1}]
  %15 = xla_tuple %s13, %s14
  %s16 = sld [smem:[#allocation0]]
  $region125: #{tpu_custom_call.1} parent=0
    _
  %s18 = ssub.s32 1, %s16
  %s19 = scalar_select 0, %s18, %s16
  $region1: #{tpu_custom_call.1} parent=0
    #allocation3 [shape = 'u8[16384]{0}', space=vmem, size = 0x4000, scoped, tag = 'input window, operand 0']
    #allocation4 [shape = 's32[2]{0}', space=sflag, size = 0x8, scoped, tag = 'scoped memory for tpu_custom_call.1']
    #allocation5 [shape = 's32[2]{0}', space=sflag, size = 0x8, scoped, tag = 'scoped memory for tpu_custom_call.1']
    #allocation6 [shape = 'u8[131072]{0}', space=vmem, size = 0x20000, scoped, tag = 'input window, operand 1']
    #allocation7 [shape = 's32[2]{0}', space=sflag, size = 0x8, scoped, tag = 'scoped memory for tpu_custom_call.1']
    #allocation8 [shape = 'u8[32768]{0}', space=vmem, size = 0x8000, scoped, tag = 'input window, operand 2, single buffered']
    #allocation9 [shape = 'u8[65536]{0}', space=vmem, size = 0x10000, scoped, tag = 'input window, operand 3, single buffered']
    #allocation10 [shape = 's32[1]{0}', space=sflag, size = 0x4, scoped, tag = 'scoped memory for tpu_custom_call.1']
    #allocation11 [shape = 'u8[32768]{0}', space=vmem, size = 0x8000, scoped, tag = 'input window, operand 4, single buffered']
    #allocation12 [shape = 'u8[65536]{0}', space=vmem, size = 0x10000, scoped, tag = 'input window, operand 7, single buffered']
    #allocation13 [shape = 's32[1]{0}', space=sflag, size = 0x4, scoped, tag = 'scoped memory for tpu_custom_call.1']
    #allocation14 [shape = 'u8[65536]{0}', space=vmem, size = 0x10000, scoped, tag = 'input window, operand 9, single buffered']
    #allocation15 [shape = 'u8[16384]{0}', space=vmem, size = 0x4000, scoped, tag = 'output window, operand 0']
    #allocation16 [shape = 'u8[65536]{0}', space=vmem, size = 0x10000, scoped, tag = 'output window, operand 1']
    #allocation17 [shape = 's32[2]{0}', space=sflag, size = 0x8, scoped, tag = 'scoped memory for tpu_custom_call.1']
    %20 = vsyncpa [#allocation4], 0
    %s21 = scalar_lea.sflag [#allocation4], 1
    %22 = vsyncpa %s21, 0
    %23 = vsyncpa [#allocation7], 0
    %s24 = scalar_lea.sflag [#allocation7], 1
    %25 = vsyncpa %s24, 0
    %26 = vsyncpa [#allocation10], 0
    %27 = vsyncpa [#allocation13], 0
    %28 = vsyncpa [#allocation5], 0
    %s29 = scalar_lea.sflag [#allocation5], 1
    %30 = vsyncpa %s29, 0
    %31 = vsyncpa [#allocation17], 0
    %s32 = scalar_lea.sflag [#allocation17], 1
    %33 = vsyncpa %s32, 0
    loop: start=0, step=1, limit=4
    $region2: #{tpu_custom_call.1} parent=1 // loop_pre_header
      _
    $region3: #{tpu_custom_call.1} parent=1 // loop_header
      %s35 = sphi 0, %s39
      %p36 = scmp.ge.s32.totalorder %s35, 4
      %s42 = sphi 0, %s54
      %s43 = sphi 0, %s50
      %s44 = sphi 0, %s42
      %s45 = sphi 0, %s43
      %s46 = sphi 0, %s44
      %s47 = sphi 0, %s45
      %s59 = sphi 0, %s61
      %s62 = sphi 0, %s59
      %s63 = sphi 0, %s62
      %s79 = sphi 0, %s63
      %s85 = sphi 0, %s87
      %s88 = sphi 0, %s85
      %s89 = sphi 0, %s88
      %s105 = sphi 0, %s89
      %s109 = sphi 0, %s109
      %s111 = sphi 0, %s109
      %s112 = sphi 0, %s111
      %s126 = sphi 0, %s112
      %s130 = sphi 0, %s130
      %s132 = sphi 0, %s130
      %s133 = sphi 0, %s132
      %s147 = sphi 0, %s133
      %s151 = sphi 0, %s151
      %s153 = sphi 0, %s151
      %s154 = sphi 0, %s153
      %s168 = sphi 0, %s154
      %s172 = sphi 0, %s172
      %s174 = sphi 0, %s172
      %s175 = sphi 0, %s174
      %s189 = sphi 0, %s175
      %s193 = sphi 0, %s193
      %s195 = sphi 0, %s193
      %s196 = sphi 0, %s195
      %s210 = sphi 0, %s196
      %s214 = sphi 0, %s214
      %s216 = sphi 0, %s214
      %s217 = sphi 0, %s216
      %s231 = sphi 0, %s217
      %s235 = sphi 0, %s235
      %s237 = sphi 0, %s235
      %s238 = sphi 0, %s237
      %s252 = sphi 0, %s238
      %s256 = sphi 0, %s256
      %s258 = sphi 0, %s256
      %s259 = sphi 0, %s258
      %s273 = sphi 0, %s259
      %s277 = sphi 0, %s277
      %s279 = sphi 0, %s277
      %s280 = sphi 0, %s279
      %s294 = sphi 0, %s280
      %s298 = sphi 0, %s298
      %s300 = sphi 0, %s298
      %s301 = sphi 0, %s300
      %s315 = sphi 0, %s301
      %s319 = sphi 0, %s319
      %s321 = sphi 0, %s319
      %s322 = sphi 0, %s321
      %s336 = sphi 0, %s322
      %s344 = sphi 0, %s346
      %s347 = sphi 0, %s344
      %s348 = sphi 0, %s347
      %s364 = sphi 0, %s348
      %s372 = sphi 0, %s374
      %s375 = sphi 0, %s372
      %s376 = sphi 0, %s375
      %s392 = sphi 0, %s376
    $region4: #{tpu_custom_call.1} parent=1 // loop_header_branch
      %38 = sbr.rel (%p36) target = $region8
    $region5: #{tpu_custom_call.1} parent=1 // loop_body
      %s40 = ssub.s32 %s35, 1
      %s41 = ssub.s32 %s35, 2
      %s48 = sadd.s32 1, %s43
      %p49 = scmp.ge.s32.totalorder %s48, 1
      %s50 = scalar_select %p49, 0, %s48
      %s51 = sadd.s32 1, %s42
      %s52 = scalar_select %p49, %s51, %s42
      %p53 = scmp.ge.s32.totalorder %s52, 2
      %s54 = scalar_select %p53, 0, %s52
      %s55 = ssub.s32 %s42, %s54
      %s56 = ssub.s32 %s43, %s50
      %s57 = sor.u32 %s55, %s56
      %p58 = scmp.eq.s32.totalorder %s57, 0
      %s60 = sadd.s32 %s59, 1
      %s61 = scalar_select %p58, %s59, %s60
      %p64 = pneg %p58
      %p65 = scmp.eq.s32.totalorder %s35, 1
      %p66 = por %p64, %p65
      %p67 = scmp.ne.s32.totalorder %s59, %s62
      %p68 = scmp.eq.s32.totalorder %s35, 0
      %p69 = por %p67, %p68
      %p70 = scmp.ne.s32.totalorder %s59, %s62
      %p71 = scmp.eq.s32.totalorder %s40, 1
      %p72 = por %p70, %p71
      %p73 = scmp.ne.s32.totalorder %s62, %s63
      %p74 = scmp.eq.s32.totalorder %s40, 0
      %p75 = por %p73, %p74
      %p76 = scmp.ne.s32.totalorder %s62, %s63
      %p77 = scmp.eq.s32.totalorder %s41, 1
      %p78 = por %p76, %p77
      %p80 = scmp.ne.s32.totalorder %s63, %s79
      %p81 = scmp.eq.s32.totalorder %s41, 0
      %p82 = por %p80, %p81
      %s83 = ssub.s32 %s42, %s54
      %p84 = scmp.eq.s32.totalorder %s83, 0
      %s86 = sadd.s32 %s85, 1
      %s87 = scalar_select %p84, %s85, %s86
      %p90 = pneg %p84
      %p91 = scmp.eq.s32.totalorder %s35, 1
      %p92 = por %p90, %p91
      %p93 = scmp.ne.s32.totalorder %s85, %s88
      %p94 = scmp.eq.s32.totalorder %s35, 0
      %p95 = por %p93, %p94
      %p96 = scmp.ne.s32.totalorder %s85, %s88
      %p97 = scmp.eq.s32.totalorder %s40, 1
      %p98 = por %p96, %p97
      %p99 = scmp.ne.s32.totalorder %s88, %s89
      %p100 = scmp.eq.s32.totalorder %s40, 0
      %p101 = por %p99, %p100
      %p102 = scmp.ne.s32.totalorder %s88, %s89
      %p103 = scmp.eq.s32.totalorder %s41, 1
      %p104 = por %p102, %p103
      %p106 = scmp.ne.s32.totalorder %s89, %s105
      %p107 = scmp.eq.s32.totalorder %s41, 0
      %p108 = por %p106, %p107
      %s110 = sadd.s32 %s109, 1
      %p113 = scmp.eq.s32.totalorder %s35, 1
      %p114 = scmp.ne.s32.totalorder %s109, %s111
      %p115 = scmp.eq.s32.totalorder %s35, 0
      %p116 = por %p114, %p115
      %p117 = scmp.ne.s32.totalorder %s109, %s111
      %p118 = scmp.eq.s32.totalorder %s40, 1
      %p119 = por %p117, %p118
      %p120 = scmp.ne.s32.totalorder %s111, %s112
      %p121 = scmp.eq.s32.totalorder %s40, 0
      %p122 = por %p120, %p121
      %p123 = scmp.ne.s32.totalorder %s111, %s112
      %p124 = scmp.eq.s32.totalorder %s41, 1
      %p125 = por %p123, %p124
      %p127 = scmp.ne.s32.totalorder %s112, %s126
      %p128 = scmp.eq.s32.totalorder %s41, 0
      %p129 = por %p127, %p128
      %s131 = sadd.s32 %s130, 1
      %p134 = scmp.eq.s32.totalorder %s35, 1
      %p135 = scmp.ne.s32.totalorder %s130, %s132
      %p136 = scmp.eq.s32.totalorder %s35, 0
      %p137 = por %p135, %p136
      %p138 = scmp.ne.s32.totalorder %s130, %s132
      %p139 = scmp.eq.s32.totalorder %s40, 1
      %p140 = por %p138, %p139
      %p141 = scmp.ne.s32.totalorder %s132, %s133
      %p142 = scmp.eq.s32.totalorder %s40, 0
      %p143 = por %p141, %p142
      %p144 = scmp.ne.s32.totalorder %s132, %s133
      %p145 = scmp.eq.s32.totalorder %s41, 1
      %p146 = por %p144, %p145
      %p148 = scmp.ne.s32.totalorder %s133, %s147
      %p149 = scmp.eq.s32.totalorder %s41, 0
      %p150 = por %p148, %p149
      %s152 = sadd.s32 %s151, 1
      %p155 = scmp.eq.s32.totalorder %s35, 1
      %p156 = scmp.ne.s32.totalorder %s151, %s153
      %p157 = scmp.eq.s32.totalorder %s35, 0
      %p158 = por %p156, %p157
      %p159 = scmp.ne.s32.totalorder %s151, %s153
      %p160 = scmp.eq.s32.totalorder %s40, 1
      %p161 = por %p159, %p160
      %p162 = scmp.ne.s32.totalorder %s153, %s154
      %p163 = scmp.eq.s32.totalorder %s40, 0
      %p164 = por %p162, %p163
      %p165 = scmp.ne.s32.totalorder %s153, %s154
      %p166 = scmp.eq.s32.totalorder %s41, 1
      %p167 = por %p165, %p166
      %p169 = scmp.ne.s32.totalorder %s154, %s168
      %p170 = scmp.eq.s32.totalorder %s41, 0
      %p171 = por %p169, %p170
      %s173 = sadd.s32 %s172, 1
      %p176 = scmp.eq.s32.totalorder %s35, 1
      %p177 = scmp.ne.s32.totalorder %s172, %s174
      %p178 = scmp.eq.s32.totalorder %s35, 0
      %p179 = por %p177, %p178
      %p180 = scmp.ne.s32.totalorder %s172, %s174
      %p181 = scmp.eq.s32.totalorder %s40, 1
      %p182 = por %p180, %p181
      %p183 = scmp.ne.s32.totalorder %s174, %s175
      %p184 = scmp.eq.s32.totalorder %s40, 0
      %p185 = por %p183, %p184
      %p186 = scmp.ne.s32.totalorder %s174, %s175
      %p187 = scmp.eq.s32.totalorder %s41, 1
      %p188 = por %p186, %p187
      %p190 = scmp.ne.s32.totalorder %s175, %s189
      %p191 = scmp.eq.s32.totalorder %s41, 0
      %p192 = por %p190, %p191
      %s194 = sadd.s32 %s193, 1
      %p197 = scmp.eq.s32.totalorder %s35, 1
      %p198 = scmp.ne.s32.totalorder %s193, %s195
      %p199 = scmp.eq.s32.totalorder %s35, 0
      %p200 = por %p198, %p199
      %p201 = scmp.ne.s32.totalorder %s193, %s195
      %p202 = scmp.eq.s32.totalorder %s40, 1
      %p203 = por %p201, %p202
      %p204 = scmp.ne.s32.totalorder %s195, %s196
      %p205 = scmp.eq.s32.totalorder %s40, 0
      %p206 = por %p204, %p205
      %p207 = scmp.ne.s32.totalorder %s195, %s196
      %p208 = scmp.eq.s32.totalorder %s41, 1
      %p209 = por %p207, %p208
      %p211 = scmp.ne.s32.totalorder %s196, %s210
      %p212 = scmp.eq.s32.totalorder %s41, 0
      %p213 = por %p211, %p212
      %s215 = sadd.s32 %s214, 1
      %p218 = scmp.eq.s32.totalorder %s35, 1
      %p219 = scmp.ne.s32.totalorder %s214, %s216
      %p220 = scmp.eq.s32.totalorder %s35, 0
      %p221 = por %p219, %p220
      %p222 = scmp.ne.s32.totalorder %s214, %s216
      %p223 = scmp.eq.s32.totalorder %s40, 1
      %p224 = por %p222, %p223
      %p225 = scmp.ne.s32.totalorder %s216, %s217
      %p226 = scmp.eq.s32.totalorder %s40, 0
      %p227 = por %p225, %p226
      %p228 = scmp.ne.s32.totalorder %s216, %s217
      %p229 = scmp.eq.s32.totalorder %s41, 1
      %p230 = por %p228, %p229
      %p232 = scmp.ne.s32.totalorder %s217, %s231
      %p233 = scmp.eq.s32.totalorder %s41, 0
      %p234 = por %p232, %p233
      %s236 = sadd.s32 %s235, 1
      %p239 = scmp.eq.s32.totalorder %s35, 1
      %p240 = scmp.ne.s32.totalorder %s235, %s237
      %p241 = scmp.eq.s32.totalorder %s35, 0
      %p242 = por %p240, %p241
      %p243 = scmp.ne.s32.totalorder %s235, %s237
      %p244 = scmp.eq.s32.totalorder %s40, 1
      %p245 = por %p243, %p244
      %p246 = scmp.ne.s32.totalorder %s237, %s238
      %p247 = scmp.eq.s32.totalorder %s40, 0
      %p248 = por %p246, %p247
      %p249 = scmp.ne.s32.totalorder %s237, %s238
      %p250 = scmp.eq.s32.totalorder %s41, 1
      %p251 = por %p249, %p250
      %p253 = scmp.ne.s32.totalorder %s238, %s252
      %p254 = scmp.eq.s32.totalorder %s41, 0
      %p255 = por %p253, %p254
      %s257 = sadd.s32 %s256, 1
      %p260 = scmp.eq.s32.totalorder %s35, 1
      %p261 = scmp.ne.s32.totalorder %s256, %s258
      %p262 = scmp.eq.s32.totalorder %s35, 0
      %p263 = por %p261, %p262
      %p264 = scmp.ne.s32.totalorder %s256, %s258
      %p265 = scmp.eq.s32.totalorder %s40, 1
      %p266 = por %p264, %p265
      %p267 = scmp.ne.s32.totalorder %s258, %s259
      %p268 = scmp.eq.s32.totalorder %s40, 0
      %p269 = por %p267, %p268
      %p270 = scmp.ne.s32.totalorder %s258, %s259
      %p271 = scmp.eq.s32.totalorder %s41, 1
      %p272 = por %p270, %p271
      %p274 = scmp.ne.s32.totalorder %s259, %s273
      %p275 = scmp.eq.s32.totalorder %s41, 0
      %p276 = por %p274, %p275
      %s278 = sadd.s32 %s277, 1
      %p281 = scmp.eq.s32.totalorder %s35, 1
      %p282 = scmp.ne.s32.totalorder %s277, %s279
      %p283 = scmp.eq.s32.totalorder %s35, 0
      %p284 = por %p282, %p283
      %p285 = scmp.ne.s32.totalorder %s277, %s279
      %p286 = scmp.eq.s32.totalorder %s40, 1
      %p287 = por %p285, %p286
      %p288 = scmp.ne.s32.totalorder %s279, %s280
      %p289 = scmp.eq.s32.totalorder %s40, 0
      %p290 = por %p288, %p289
      %p291 = scmp.ne.s32.totalorder %s279, %s280
      %p292 = scmp.eq.s32.totalorder %s41, 1
      %p293 = por %p291, %p292
      %p295 = scmp.ne.s32.totalorder %s280, %s294
      %p296 = scmp.eq.s32.totalorder %s41, 0
      %p297 = por %p295, %p296
      %s299 = sadd.s32 %s298, 1
      %p302 = scmp.eq.s32.totalorder %s35, 1
      %p303 = scmp.ne.s32.totalorder %s298, %s300
      %p304 = scmp.eq.s32.totalorder %s35, 0
      %p305 = por %p303, %p304
      %p306 = scmp.ne.s32.totalorder %s298, %s300
      %p307 = scmp.eq.s32.totalorder %s40, 1
      %p308 = por %p306, %p307
      %p309 = scmp.ne.s32.totalorder %s300, %s301
      %p310 = scmp.eq.s32.totalorder %s40, 0
      %p311 = por %p309, %p310
      %p312 = scmp.ne.s32.totalorder %s300, %s301
      %p313 = scmp.eq.s32.totalorder %s41, 1
      %p314 = por %p312, %p313
      %p316 = scmp.ne.s32.totalorder %s301, %s315
      %p317 = scmp.eq.s32.totalorder %s41, 0
      %p318 = por %p316, %p317
      %s320 = sadd.s32 %s319, 1
      %p323 = scmp.eq.s32.totalorder %s35, 1
      %p324 = scmp.ne.s32.totalorder %s319, %s321
      %p325 = scmp.eq.s32.totalorder %s35, 0
      %p326 = por %p324, %p325
      %p327 = scmp.ne.s32.totalorder %s319, %s321
      %p328 = scmp.eq.s32.totalorder %s40, 1
      %p329 = por %p327, %p328
      %p330 = scmp.ne.s32.totalorder %s321, %s322
      %p331 = scmp.eq.s32.totalorder %s40, 0
      %p332 = por %p330, %p331
      %p333 = scmp.ne.s32.totalorder %s321, %s322
      %p334 = scmp.eq.s32.totalorder %s41, 1
      %p335 = por %p333, %p334
      %p337 = scmp.ne.s32.totalorder %s322, %s336
      %p338 = scmp.eq.s32.totalorder %s41, 0
      %p339 = por %p337, %p338
      %s340 = ssub.s32 %s42, %s54
      %s341 = ssub.s32 %s43, %s50
      %s342 = sor.u32 %s340, %s341
      %p343 = scmp.eq.s32.totalorder %s342, 0
      %s345 = sadd.s32 %s344, 1
      %s346 = scalar_select %p343, %s344, %s345
      %p349 = pneg %p343
      %p350 = scmp.eq.s32.totalorder %s35, 1
      %p351 = por %p349, %p350
      %p352 = scmp.ne.s32.totalorder %s344, %s347
      %p353 = scmp.eq.s32.totalorder %s35, 0
      %p354 = por %p352, %p353
      %p355 = scmp.ne.s32.totalorder %s344, %s347
      %p356 = scmp.eq.s32.totalorder %s40, 1
      %p357 = por %p355, %p356
      %p358 = scmp.ne.s32.totalorder %s347, %s348
      %p359 = scmp.eq.s32.totalorder %s40, 0
      %p360 = por %p358, %p359
      %p361 = scmp.ne.s32.totalorder %s347, %s348
      %p362 = scmp.eq.s32.totalorder %s41, 1
      %p363 = por %p361, %p362
      %p365 = scmp.ne.s32.totalorder %s348, %s364
      %p366 = scmp.eq.s32.totalorder %s41, 0
      %p367 = por %p365, %p366
      %s368 = ssub.s32 %s42, %s54
      %s369 = ssub.s32 %s43, %s50
      %s370 = sor.u32 %s368, %s369
      %p371 = scmp.eq.s32.totalorder %s370, 0
      %s373 = sadd.s32 %s372, 1
      %s374 = scalar_select %p371, %s372, %s373
      %p377 = pneg %p371
      %p378 = scmp.eq.s32.totalorder %s35, 1
      %p379 = por %p377, %p378
      %p380 = scmp.ne.s32.totalorder %s372, %s375
      %p381 = scmp.eq.s32.totalorder %s35, 0
      %p382 = por %p380, %p381
      %p383 = scmp.ne.s32.totalorder %s372, %s375
      %p384 = scmp.eq.s32.totalorder %s40, 1
      %p385 = por %p383, %p384
      %p386 = scmp.ne.s32.totalorder %s375, %s376
      %p387 = scmp.eq.s32.totalorder %s40, 0
      %p388 = por %p386, %p387
      %p389 = scmp.ne.s32.totalorder %s375, %s376
      %p390 = scmp.eq.s32.totalorder %s41, 1
      %p391 = por %p389, %p390
      %p393 = scmp.ne.s32.totalorder %s376, %s392
      %p394 = scmp.eq.s32.totalorder %s41, 0
      %p395 = por %p393, %p394
      %p396 = scmp.le.s32.totalorder 1, %s35
      %p397 = scmp.lt.s32.totalorder %s35, 3
      %p398 = pnand %p396, %p397
      %p399 = pneg %p398
      // Predicated region
      $region9: #{tpu_custom_call.1} parent=5 // pred_check
        _
      $region10: #{tpu_custom_call.1} parent=5 // pred_check_branch
        %401 = sbr.rel (%p398) target = $region12
      $region11: #{tpu_custom_call.1} parent=5 // pred_region
        %s402 = ssub.s32 %s35, 1
        // Predicated region
        $region13: #{tpu_custom_call.1} parent=11 // pred_check
          %p403 = pneg %p122
        $region14: #{tpu_custom_call.1} parent=11 // pred_check_branch
          %405 = sbr.rel (%p403) target = $region16
        $region15: #{tpu_custom_call.1} parent=11 // pred_region
          %407 = vsyncadd [#allocation7], 0
          %s408 = sshll.u32 %s2, 4
          %s409 = int_to_ptr.hbm [resolvable:$true] %s408
          %s410 = sshll.u32 [#allocation8], 4
          %s411 = int_to_ptr.vmem [resolvable:$true] %s410
          %416 = dma.hbm_to_vmem [thread:$0]  %s409, 1024, %s411, [#allocation7], 64, 64, 4
        $region16: #{tpu_custom_call.1} parent=11 // pred_fallthru
          _
        // Predicated region
        $region17: #{tpu_custom_call.1} parent=11 // pred_check
          %p417 = pneg %p143
        $region18: #{tpu_custom_call.1} parent=11 // pred_check_branch
          %419 = sbr.rel (%p417) target = $region20
        $region19: #{tpu_custom_call.1} parent=11 // pred_region
          %421 = vsyncadd [#allocation10], 0
          %s422 = sshll.u32 %s3, 4
          %s423 = int_to_ptr.hbm [resolvable:$true] %s422
          %s424 = sshll.u32 [#allocation9], 4
          %s425 = int_to_ptr.vmem [resolvable:$true] %s424
          %430 = dma.hbm_to_vmem [thread:$0]  %s423, 2048, %s425, [#allocation10], 128, 128, 8
        $region20: #{tpu_custom_call.1} parent=11 // pred_fallthru
          _
        // Predicated region
        $region21: #{tpu_custom_call.1} parent=11 // pred_check
          %p431 = pneg %p164
        $region22: #{tpu_custom_call.1} parent=11 // pred_check_branch
          %433 = sbr.rel (%p431) target = $region24
        $region23: #{tpu_custom_call.1} parent=11 // pred_region
          %435 = vsyncadd [#allocation10], 0
          %s436 = sshll.u32 %s4, 4
          %s437 = int_to_ptr.hbm [resolvable:$true] %s436
          %s438 = sshll.u32 [#allocation11], 4
          %s439 = int_to_ptr.vmem [resolvable:$true] %s438
          %444 = dma.hbm_to_vmem [thread:$0]  %s437, 1024, %s439, [#allocation10], 64, 64, 4
        $region24: #{tpu_custom_call.1} parent=11 // pred_fallthru
          _
        // Predicated region
        $region25: #{tpu_custom_call.1} parent=11 // pred_check
          %p445 = pneg %p185
        $region26: #{tpu_custom_call.1} parent=11 // pred_check_branch
          %447 = sbr.rel (%p445) target = $region28
        $region27: #{tpu_custom_call.1} parent=11 // pred_region
          _
        $region28: #{tpu_custom_call.1} parent=11 // pred_fallthru
          _
        // Predicated region
        $region29: #{tpu_custom_call.1} parent=11 // pred_check
          %p448 = pneg %p206
        $region30: #{tpu_custom_call.1} parent=11 // pred_check_branch
          %450 = sbr.rel (%p448) target = $region32
        $region31: #{tpu_custom_call.1} parent=11 // pred_region
          _
        $region32: #{tpu_custom_call.1} parent=11 // pred_fallthru
          _
        // Predicated region
        $region33: #{tpu_custom_call.1} parent=11 // pred_check
          %p451 = pneg %p227
        $region34: #{tpu_custom_call.1} parent=11 // pred_check_branch
          %453 = sbr.rel (%p451) target = $region36
        $region35: #{tpu_custom_call.1} parent=11 // pred_region
          %455 = vsyncadd [#allocation13], 0
          %s456 = sshll.u32 %s7, 4
          %s457 = int_to_ptr.hbm [resolvable:$true] %s456
          %s458 = sshll.u32 [#allocation12], 4
          %s459 = int_to_ptr.vmem [resolvable:$true] %s458
          %464 = dma.hbm_to_vmem [thread:$0]  %s457, 2048, %s459, [#allocation13], 128, 128, 8
        $region36: #{tpu_custom_call.1} parent=11 // pred_fallthru
          _
        // Predicated region
        $region37: #{tpu_custom_call.1} parent=11 // pred_check
          %p465 = pneg %p248
        $region38: #{tpu_custom_call.1} parent=11 // pred_check_branch
          %467 = sbr.rel (%p465) target = $region40
        $region39: #{tpu_custom_call.1} parent=11 // pred_region
          _
        $region40: #{tpu_custom_call.1} parent=11 // pred_fallthru
          _
        // Predicated region
        $region41: #{tpu_custom_call.1} parent=11 // pred_check
          %p468 = pneg %p269
        $region42: #{tpu_custom_call.1} parent=11 // pred_check_branch
          %470 = sbr.rel (%p468) target = $region44
        $region43: #{tpu_custom_call.1} parent=11 // pred_region
          %472 = vsyncadd [#allocation13], 0
          %s473 = sshll.u32 %s9, 4
          %s474 = int_to_ptr.hbm [resolvable:$true] %s473
          %s475 = sshll.u32 [#allocation14], 4
          %s476 = int_to_ptr.vmem [resolvable:$true] %s475
          %481 = dma.hbm_to_vmem [thread:$0]  %s474, 2048, %s476, [#allocation13], 64, 64, 4
        $region44: #{tpu_custom_call.1} parent=11 // pred_fallthru
          _
        // Predicated region
        $region45: #{tpu_custom_call.1} parent=11 // pred_check
          %p482 = pneg %p290
        $region46: #{tpu_custom_call.1} parent=11 // pred_check_branch
          %484 = sbr.rel (%p482) target = $region48
        $region47: #{tpu_custom_call.1} parent=11 // pred_region
          _
        $region48: #{tpu_custom_call.1} parent=11 // pred_fallthru
          _
        // Predicated region
        $region49: #{tpu_custom_call.1} parent=11 // pred_check
          %p485 = pneg %p311
        $region50: #{tpu_custom_call.1} parent=11 // pred_check_branch
          %487 = sbr.rel (%p485) target = $region52
        $region51: #{tpu_custom_call.1} parent=11 // pred_region
          _
        $region52: #{tpu_custom_call.1} parent=11 // pred_fallthru
          _
        // Predicated region
        $region53: #{tpu_custom_call.1} parent=11 // pred_check
          %p488 = pneg %p332
        $region54: #{tpu_custom_call.1} parent=11 // pred_check_branch
          %490 = sbr.rel (%p488) target = $region56
        $region55: #{tpu_custom_call.1} parent=11 // pred_region
          _
        $region56: #{tpu_custom_call.1} parent=11 // pred_fallthru
          _
      $region12: #{tpu_custom_call.1} parent=5 // pred_fallthru
        _
      %p491 = scmp.lt.s32.totalorder %s35, 2
      // Predicated region
      $region57: #{tpu_custom_call.1} parent=5 // pred_check
        %p492 = pneg %p491
      $region58: #{tpu_custom_call.1} parent=5 // pred_check_branch
        %494 = sbr.rel (%p492) target = $region60
      $region59: #{tpu_custom_call.1} parent=5 // pred_region
        // Predicated region
        $region61: #{tpu_custom_call.1} parent=59 // pred_check
          %p495 = pneg %p69
        $region62: #{tpu_custom_call.1} parent=59 // pred_check_branch
          %497 = sbr.rel (%p495) target = $region64
        $region63: #{tpu_custom_call.1} parent=59 // pred_region
          %s498 = sand.u32 %s59, 1
          %s499 = scalar_lea.sflag [#allocation4], %s498
          %s500 = sand.u32 %s59, 1
          %s501 = smul.addr %s500, 16
          %s502 = scalar_lea.vmem [#allocation3], %s501
          %s503 = smul.u32 2, %s43
          %505 = vsyncadd %s499, 0
          %s506 = smul.addr %s42, 2
          %s507 = sadd.s32 %s503, %s506
          %s508 = smul.addr %s507, 8
          %s509 = scalar_lea.hbm %s0, %s508
          %s510 = sshll.u32 %s509, 4
          %s511 = int_to_ptr.hbm [resolvable:$true] %s510
          %s512 = sshll.u32 %s502, 4
          %s513 = int_to_ptr.vmem [resolvable:$true] %s512
          %518 = dma.hbm_to_vmem [thread:$0]  %s511, 256, %s513, %s499, 128, 128, 8
        $region64: #{tpu_custom_call.1} parent=59 // pred_fallthru
          _
        // Predicated region
        $region65: #{tpu_custom_call.1} parent=59 // pred_check
          %p519 = pneg %p95
        $region66: #{tpu_custom_call.1} parent=59 // pred_check_branch
          %521 = sbr.rel (%p519) target = $region68
        $region67: #{tpu_custom_call.1} parent=59 // pred_region
          %s522 = sand.u32 %s35, 1
          %s523 = scalar_lea.sflag [#allocation7], %s522
          %s524 = sand.u32 %s85, 1
          %s525 = smul.addr %s524, 128
          %s526 = scalar_lea.vmem [#allocation6], %s525
          %528 = vsyncadd %s523, 0
          %s529 = smul.addr %s42, 16
          %s530 = smul.addr %s529, 8
          %s531 = scalar_lea.hbm %s1, %s530
          %s532 = sshll.u32 %s531, 4
          %s533 = int_to_ptr.hbm [resolvable:$true] %s532
          %s534 = sshll.u32 %s526, 4
          %s535 = int_to_ptr.vmem [resolvable:$true] %s534
          %540 = dma.hbm_to_vmem [thread:$0]  %s533, 2048, %s535, %s523, 128, 128, 8
        $region68: #{tpu_custom_call.1} parent=59 // pred_fallthru
          _
      $region60: #{tpu_custom_call.1} parent=5 // pred_fallthru
        _
      %p541 = scmp.le.s32.totalorder 1, %s35
      %p542 = scmp.lt.s32.totalorder %s35, 3
      %p543 = pnand %p541, %p542
      %p544 = pneg %p543
      // Predicated region
      $region69: #{tpu_custom_call.1} parent=5 // pred_check
        _
      $region70: #{tpu_custom_call.1} parent=5 // pred_check_branch
        %546 = sbr.rel (%p543) target = $region72
      $region71: #{tpu_custom_call.1} parent=5 // pred_region
        %s547 = ssub.s32 %s35, 1
        %s548 = sand.u32 %s62, 1
        %s549 = scalar_lea.sflag [#allocation4], %s548
        %s550 = sand.u32 %s62, 1
        %s551 = smul.addr %s550, 16
        %s552 = scalar_lea.vmem [#allocation3], %s551
        // Predicated region
        $region73: #{tpu_custom_call.1} parent=71 // pred_check
          %p553 = pneg %p75
        $region74: #{tpu_custom_call.1} parent=71 // pred_check_branch
          %555 = sbr.rel (%p553) target = $region76
        $region75: #{tpu_custom_call.1} parent=71 // pred_region
          %557 = dma.done %s549, 256
        $region76: #{tpu_custom_call.1} parent=71 // pred_fallthru
          _
        %s558 = sand.u32 %s40, 1
        %s559 = scalar_lea.sflag [#allocation7], %s558
        %s560 = sand.u32 %s88, 1
        %s561 = smul.addr %s560, 128
        %s562 = scalar_lea.vmem [#allocation6], %s561
        // Predicated region
        $region77: #{tpu_custom_call.1} parent=71 // pred_check
          %p563 = pneg %p101
        $region78: #{tpu_custom_call.1} parent=71 // pred_check_branch
          %565 = sbr.rel (%p563) target = $region80
        $region79: #{tpu_custom_call.1} parent=71 // pred_region
          %567 = dma.done %s559, 2048
        $region80: #{tpu_custom_call.1} parent=71 // pred_fallthru
          _
        // Predicated region
        $region81: #{tpu_custom_call.1} parent=71 // pred_check
          %p568 = pneg %p122
        $region82: #{tpu_custom_call.1} parent=71 // pred_check_branch
          %570 = sbr.rel (%p568) target = $region84
        $region83: #{tpu_custom_call.1} parent=71 // pred_region
          %572 = dma.done [#allocation7], 1024
        $region84: #{tpu_custom_call.1} parent=71 // pred_fallthru
          _
        // Predicated region
        $region85: #{tpu_custom_call.1} parent=71 // pred_check
          %p573 = pneg %p143
        $region86: #{tpu_custom_call.1} parent=71 // pred_check_branch
          %575 = sbr.rel (%p573) target = $region88
        $region87: #{tpu_custom_call.1} parent=71 // pred_region
          %577 = dma.done [#allocation10], 2048
        $region88: #{tpu_custom_call.1} parent=71 // pred_fallthru
          _
        // Predicated region
        $region89: #{tpu_custom_call.1} parent=71 // pred_check
          %p578 = pneg %p164
        $region90: #{tpu_custom_call.1} parent=71 // pred_check_branch
          %580 = sbr.rel (%p578) target = $region92
        $region91: #{tpu_custom_call.1} parent=71 // pred_region
          %582 = dma.done [#allocation10], 1024
        $region92: #{tpu_custom_call.1} parent=71 // pred_fallthru
          _
        // Predicated region
        $region93: #{tpu_custom_call.1} parent=71 // pred_check
          %p583 = pneg %p227
        $region94: #{tpu_custom_call.1} parent=71 // pred_check_branch
          %585 = sbr.rel (%p583) target = $region96
        $region95: #{tpu_custom_call.1} parent=71 // pred_region
          %587 = dma.done [#allocation13], 2048
        $region96: #{tpu_custom_call.1} parent=71 // pred_fallthru
          _
        // Predicated region
        $region97: #{tpu_custom_call.1} parent=71 // pred_check
          %p588 = pneg %p269
        $region98: #{tpu_custom_call.1} parent=71 // pred_check_branch
          %590 = sbr.rel (%p588) target = $region100
        $region99: #{tpu_custom_call.1} parent=71 // pred_region
          %592 = dma.done [#allocation13], 2048
        $region100: #{tpu_custom_call.1} parent=71 // pred_fallthru
          _
        %s593 = sand.u32 %s62, 1
        %s594 = scalar_lea.sflag [#allocation4], %s593
        %s595 = sand.u32 %s62, 1
        %s596 = smul.addr %s595, 16
        %s597 = scalar_lea.vmem [#allocation3], %s596
        %p598 = pneg %p75
        %p599 = pneg %p72
        %s600 = sand.u32 %s40, 1
        %s601 = scalar_lea.sflag [#allocation7], %s600
        %s602 = sand.u32 %s88, 1
        %s603 = smul.addr %s602, 128
        %s604 = scalar_lea.vmem [#allocation6], %s603
        %p605 = pneg %p101
        %p606 = pneg %p98
        %p607 = pneg %p122
        %p608 = pneg %p119
        %p609 = pneg %p143
        %p610 = pneg %p140
        %p611 = pneg %p164
        %p612 = pneg %p161
        %p613 = pneg %p185
        %p614 = pneg %p182
        %p615 = pneg %p206
        %p616 = pneg %p203
        %p617 = pneg %p227
        %p618 = pneg %p224
        %p619 = pneg %p248
        %p620 = pneg %p245
        %p621 = pneg %p269
        %p622 = pneg %p266
        %p623 = pneg %p290
        %p624 = pneg %p287
        %p625 = pneg %p311
        %p626 = pneg %p308
        %p627 = pneg %p332
        %p628 = pneg %p329
        %p629 = pneg %p360
        %p630 = pneg %p357
        %s631 = sand.u32 %s347, 1
        %s632 = scalar_lea.sflag [#allocation5], %s631
        %s633 = sand.u32 %s347, 1
        %s634 = smul.addr %s633, 16
        %s635 = scalar_lea.vmem [#allocation15], %s634
        %p636 = pneg %p388
        %p637 = pneg %p385
        %s638 = sand.u32 %s375, 1
        %s639 = scalar_lea.sflag [#allocation17], %s638
        %s640 = sand.u32 %s375, 1
        %s641 = smul.addr %s640, 64
        %s642 = scalar_lea.vmem [#allocation16], %s641
        %s643 = smul.u32 2, %s45
        %s644 = smul.u32 2, %s45
        %s645 = smul.u32 2, %s45
        %p647 = scmp.eq.s32.totalorder %s45, 0
        // Predicated region
        $region101: #{tpu_custom_call.1} parent=71 // pred_check
          %p648 = pneg %p647
        $region102: #{tpu_custom_call.1} parent=71 // pred_check_branch
          %650 = sbr.rel (%p648) target = $region104
        $region103: #{tpu_custom_call.1} parent=71 // pred_region
          %v651 = vld [vmem:[%s562] sm:$0xff]
          %v652 = vld [vmem:[%s562 + $0x8] sm:$0xff]
          %v653 = vld [vmem:[%s562 + $0x10] sm:$0xff]
          %v654 = vld [vmem:[%s562 + $0x18] sm:$0xff]
          %v655 = vld [vmem:[%s562 + $0x20] sm:$0xff]
          %v656 = vld [vmem:[%s562 + $0x28] sm:$0xff]
          %v657 = vld [vmem:[%s562 + $0x30] sm:$0xff]
          %v658 = vld [vmem:[%s562 + $0x38] sm:$0xff]
          %v659 = vld [vmem:[%s562 + $0x40] sm:$0xff]
          %v660 = vld [vmem:[%s562 + $0x48] sm:$0xff]
          %v661 = vld [vmem:[%s562 + $0x50] sm:$0xff]
          %v662 = vld [vmem:[%s562 + $0x58] sm:$0xff]
          %v663 = vld [vmem:[%s562 + $0x60] sm:$0xff]
          %v664 = vld [vmem:[%s562 + $0x68] sm:$0xff]
          %v665 = vld [vmem:[%s562 + $0x70] sm:$0xff]
          %v666 = vld [vmem:[%s562 + $0x78] sm:$0xff]
          %v667 = vld [vmem:[#allocation9] sm:$0xff]
          %v668 = vld [vmem:[#allocation9 + $0x8] sm:$0xff]
          %v669 = vld [vmem:[#allocation9 + $0x10] sm:$0xff]
          %v670 = vld [vmem:[#allocation9 + $0x18] sm:$0xff]
          %v671 = vld [vmem:[#allocation9 + $0x20] sm:$0xff]
          %v672 = vld [vmem:[#allocation9 + $0x28] sm:$0xff]
          %v673 = vld [vmem:[#allocation9 + $0x30] sm:$0xff]
          %v674 = vld [vmem:[#allocation9 + $0x38] sm:$0xff]
          %v675 = vld [vmem:[#allocation9 + $0x40] sm:$0xff]
          %v676 = vld [vmem:[#allocation9 + $0x48] sm:$0xff]
          %v677 = vld [vmem:[#allocation9 + $0x50] sm:$0xff]
          %v678 = vld [vmem:[#allocation9 + $0x58] sm:$0xff]
          %v679 = vld [vmem:[#allocation9 + $0x60] sm:$0xff]
          %v680 = vld [vmem:[#allocation9 + $0x68] sm:$0xff]
          %v681 = vld [vmem:[#allocation9 + $0x70] sm:$0xff]
          %v682 = vld [vmem:[#allocation9 + $0x78] sm:$0xff]
          %v683 = vpack.c.bf16 %v652, %v651
          %v684 = vpack.c.bf16 %v654, %v653
          %v685 = vpack.c.bf16 %v656, %v655
          %v686 = vpack.c.bf16 %v658, %v657
          %v687 = vpack.c.bf16 %v660, %v659
          %v688 = vpack.c.bf16 %v662, %v661
          %v689 = vpack.c.bf16 %v664, %v663
          %v690 = vpack.c.bf16 %v666, %v665
          %v707 = vunpack.c.l.b16 %v667
          %v708 = vunpack.c.h.b16 %v667
          %v709 = vunpack.c.l.b16 %v668
          %v710 = vunpack.c.h.b16 %v668
          %v711 = vunpack.c.l.b16 %v669
          %v712 = vunpack.c.h.b16 %v669
          %v713 = vunpack.c.l.b16 %v670
          %v714 = vunpack.c.h.b16 %v670
          %v715 = vunpack.c.l.b16 %v671
          %v716 = vunpack.c.h.b16 %v671
          %v717 = vunpack.c.l.b16 %v672
          %v718 = vunpack.c.h.b16 %v672
          %v719 = vunpack.c.l.b16 %v673
          %v720 = vunpack.c.h.b16 %v673
          %v721 = vunpack.c.l.b16 %v674
          %v722 = vunpack.c.h.b16 %v674
          %v723 = vunpack.c.l.b16 %v675
          %v724 = vunpack.c.h.b16 %v675
          %v725 = vunpack.c.l.b16 %v676
          %v726 = vunpack.c.h.b16 %v676
          %v727 = vunpack.c.l.b16 %v677
          %v728 = vunpack.c.h.b16 %v677
          %v729 = vunpack.c.l.b16 %v678
          %v730 = vunpack.c.h.b16 %v678
          %v731 = vunpack.c.l.b16 %v679
          %v732 = vunpack.c.h.b16 %v679
          %v733 = vunpack.c.l.b16 %v680
          %v734 = vunpack.c.h.b16 %v680
          %v735 = vunpack.c.l.b16 %v681
          %v736 = vunpack.c.h.b16 %v681
          %v737 = vunpack.c.l.b16 %v682
          %v738 = vunpack.c.h.b16 %v682
          %v739 = vpack.c.b16 %v709, %v707
          %v740 = vpack.c.b16 %v710, %v708
          %v741 = vpack.c.b16 %v713, %v711
          %v742 = vpack.c.b16 %v714, %v712
          %v743 = vpack.c.b16 %v717, %v715
          %v744 = vpack.c.b16 %v718, %v716
          %v745 = vpack.c.b16 %v721, %v719
          %v746 = vpack.c.b16 %v722, %v720
          %v747 = vpack.c.b16 %v725, %v723
          %v748 = vpack.c.b16 %v726, %v724
          %v749 = vpack.c.b16 %v729, %v727
          %v750 = vpack.c.b16 %v730, %v728
          %v751 = vpack.c.b16 %v733, %v731
          %v752 = vpack.c.b16 %v734, %v732
          %v753 = vpack.c.b16 %v737, %v735
          %v754 = vpack.c.b16 %v738, %v736
          %771 = vmatpush.bf16.msra.mxu0 %v753
          %772 = vmatpush.bf16.msra.mxu0 %v751
          %773 = vmatpush.bf16.msra.mxu0 %v749
          %774 = vmatpush.bf16.msra.mxu0 %v747
          %775 = vmatpush.bf16.msra.mxu0 %v745
          %776 = vmatpush.bf16.msra.mxu0 %v743
          %777 = vmatpush.bf16.msra.mxu0 %v741
          %778 = vmatpush.bf16.msra.mxu0 %v739
          %779 = vmatmul.bf16.gmra.mxu0 %v683
          %v780 = vpop.f32.mrf.mxu0
          %v781 = vadd.f32 0.0, %v780
          %v782 = vpop.f32.mrf.mxu0
          %v783 = vadd.f32 0.0, %v782
          %784 = vmatmul.bf16.gmra.mxu0 %v684
          %v785 = vpop.f32.mrf.mxu0
          %v786 = vadd.f32 0.0, %v785
          %v787 = vpop.f32.mrf.mxu0
          %v788 = vadd.f32 0.0, %v787
          %789 = vmatmul.bf16.gmra.mxu0 %v685
          %v790 = vpop.f32.mrf.mxu0
          %v791 = vadd.f32 0.0, %v790
          %v792 = vpop.f32.mrf.mxu0
          %v793 = vadd.f32 0.0, %v792
          %794 = vmatmul.bf16.gmra.mxu0 %v686
          %v795 = vpop.f32.mrf.mxu0
          %v796 = vadd.f32 0.0, %v795
          %v797 = vpop.f32.mrf.mxu0
          %v798 = vadd.f32 0.0, %v797
          %799 = vmatmul.bf16.gmra.mxu0 %v687
          %v800 = vpop.f32.mrf.mxu0
          %v801 = vadd.f32 0.0, %v800
          %v802 = vpop.f32.mrf.mxu0
          %v803 = vadd.f32 0.0, %v802
          %804 = vmatmul.bf16.gmra.mxu0 %v688
          %v805 = vpop.f32.mrf.mxu0
          %v806 = vadd.f32 0.0, %v805
          %v807 = vpop.f32.mrf.mxu0
          %v808 = vadd.f32 0.0, %v807
          %809 = vmatmul.bf16.gmra.mxu0 %v689
          %v810 = vpop.f32.mrf.mxu0
          %v811 = vadd.f32 0.0, %v810
          %v812 = vpop.f32.mrf.mxu0
          %v813 = vadd.f32 0.0, %v812
          %814 = vmatmul.bf16.gmra.mxu0 %v690
          %v815 = vpop.f32.mrf.mxu0
          %v816 = vadd.f32 0.0, %v815
          %v817 = vpop.f32.mrf.mxu0
          %v818 = vadd.f32 0.0, %v817
          %819 = vdwg.mxu0
          %820 = vmatpush.bf16.msra.mxu0 %v754
          %821 = vmatpush.bf16.msra.mxu0 %v752
          %822 = vmatpush.bf16.msra.mxu0 %v750
          %823 = vmatpush.bf16.msra.mxu0 %v748
          %824 = vmatpush.bf16.msra.mxu0 %v746
          %825 = vmatpush.bf16.msra.mxu0 %v744
          %826 = vmatpush.bf16.msra.mxu0 %v742
          %827 = vmatpush.bf16.msra.mxu0 %v740
          %828 = vmatmul.bf16.gmra.mxu0 %v683
          %v829 = vpop.f32.mrf.mxu0
          %v830 = vadd.f32 0.0, %v829
          %v831 = vpop.f32.mrf.mxu0
          %v832 = vadd.f32 0.0, %v831
          %833 = vmatmul.bf16.gmra.mxu0 %v684
          %v834 = vpop.f32.mrf.mxu0
          %v835 = vadd.f32 0.0, %v834
          %v836 = vpop.f32.mrf.mxu0
          %v837 = vadd.f32 0.0, %v836
          %838 = vmatmul.bf16.gmra.mxu0 %v685
          %v839 = vpop.f32.mrf.mxu0
          %v840 = vadd.f32 0.0, %v839
          %v841 = vpop.f32.mrf.mxu0
          %v842 = vadd.f32 0.0, %v841
          %843 = vmatmul.bf16.gmra.mxu0 %v686
          %v844 = vpop.f32.mrf.mxu0
          %v845 = vadd.f32 0.0, %v844
          %v846 = vpop.f32.mrf.mxu0
          %v847 = vadd.f32 0.0, %v846
          %848 = vmatmul.bf16.gmra.mxu0 %v687
          %v849 = vpop.f32.mrf.mxu0
          %v850 = vadd.f32 0.0, %v849
          %v851 = vpop.f32.mrf.mxu0
          %v852 = vadd.f32 0.0, %v851
          %853 = vmatmul.bf16.gmra.mxu0 %v688
          %v854 = vpop.f32.mrf.mxu0
          %v855 = vadd.f32 0.0, %v854
          %v856 = vpop.f32.mrf.mxu0
          %v857 = vadd.f32 0.0, %v856
          %858 = vmatmul.bf16.gmra.mxu0 %v689
          %v859 = vpop.f32.mrf.mxu0
          %v860 = vadd.f32 0.0, %v859
          %v861 = vpop.f32.mrf.mxu0
          %v862 = vadd.f32 0.0, %v861
          %863 = vmatmul.bf16.gmra.mxu0 %v690
          %v864 = vpop.f32.mrf.mxu0
          %v865 = vadd.f32 0.0, %v864
          %v866 = vpop.f32.mrf.mxu0
          %v867 = vadd.f32 0.0, %v866
          %868 = vdwg.mxu0
          %v869 = vpack.c.bf16 %v830, %v781
          %v870 = vpack.c.bf16 %v832, %v783
          %v871 = vpack.c.bf16 %v835, %v786
          %v872 = vpack.c.bf16 %v837, %v788
          %v873 = vpack.c.bf16 %v840, %v791
          %v874 = vpack.c.bf16 %v842, %v793
          %v875 = vpack.c.bf16 %v845, %v796
          %v876 = vpack.c.bf16 %v847, %v798
          %v877 = vpack.c.bf16 %v850, %v801
          %v878 = vpack.c.bf16 %v852, %v803
          %v879 = vpack.c.bf16 %v855, %v806
          %v880 = vpack.c.bf16 %v857, %v808
          %v881 = vpack.c.bf16 %v860, %v811
          %v882 = vpack.c.bf16 %v862, %v813
          %v883 = vpack.c.bf16 %v865, %v816
          %v884 = vpack.c.bf16 %v867, %v818
          %885 = vst [vmem:[#allocation2] sm:$0xff] %v869
          %886 = vst [vmem:[#allocation2 + $0x8] sm:$0xff] %v870
          %887 = vst [vmem:[#allocation2 + $0x10] sm:$0xff] %v871
          %888 = vst [vmem:[#allocation2 + $0x18] sm:$0xff] %v872
          %889 = vst [vmem:[#allocation2 + $0x20] sm:$0xff] %v873
          %890 = vst [vmem:[#allocation2 + $0x28] sm:$0xff] %v874
          %891 = vst [vmem:[#allocation2 + $0x30] sm:$0xff] %v875
          %892 = vst [vmem:[#allocation2 + $0x38] sm:$0xff] %v876
          %893 = vst [vmem:[#allocation2 + $0x40] sm:$0xff] %v877
          %894 = vst [vmem:[#allocation2 + $0x48] sm:$0xff] %v878
          %895 = vst [vmem:[#allocation2 + $0x50] sm:$0xff] %v879
          %896 = vst [vmem:[#allocation2 + $0x58] sm:$0xff] %v880
          %897 = vst [vmem:[#allocation2 + $0x60] sm:$0xff] %v881
          %898 = vst [vmem:[#allocation2 + $0x68] sm:$0xff] %v882
          %899 = vst [vmem:[#allocation2 + $0x70] sm:$0xff] %v883
          %900 = vst [vmem:[#allocation2 + $0x78] sm:$0xff] %v884
        $region104: #{tpu_custom_call.1} parent=71 // pred_fallthru
          _
        %v901 = vld [vmem:[%s552] sm:$0xff]
        %v902 = vld [vmem:[%s552 + $0x8] sm:$0xff]
        %v903 = vld [vmem:[#allocation8] sm:$0xf]
        %v904 = vld [vmem:[#allocation8 + $0x4] sm:$0xf]
        %v905 = vld [vmem:[#allocation8 + $0x8] sm:$0xf]
        %v906 = vld [vmem:[#allocation8 + $0xc] sm:$0xf]
        %v907 = vld [vmem:[#allocation8 + $0x10] sm:$0xf]
        %v908 = vld [vmem:[#allocation8 + $0x14] sm:$0xf]
        %v909 = vld [vmem:[#allocation8 + $0x18] sm:$0xf]
        %v910 = vld [vmem:[#allocation8 + $0x1c] sm:$0xf]
        %v911 = vld [vmem:[#allocation8 + $0x20] sm:$0xf]
        %v912 = vld [vmem:[#allocation8 + $0x24] sm:$0xf]
        %v913 = vld [vmem:[#allocation8 + $0x28] sm:$0xf]
        %v914 = vld [vmem:[#allocation8 + $0x2c] sm:$0xf]
        %v915 = vld [vmem:[#allocation8 + $0x30] sm:$0xf]
        %v916 = vld [vmem:[#allocation8 + $0x34] sm:$0xf]
        %v917 = vld [vmem:[#allocation8 + $0x38] sm:$0xf]
        %v918 = vld [vmem:[#allocation8 + $0x3c] sm:$0xf]
        %v919 = vpack.c.bf16 %v902, %v901
        %v936 = vunpack.c.l.b16 %v903
        %v937 = vunpack.c.l.b16 %v904
        %v938 = vunpack.c.l.b16 %v905
        %v939 = vunpack.c.l.b16 %v906
        %v940 = vunpack.c.l.b16 %v907
        %v941 = vunpack.c.l.b16 %v908
        %v942 = vunpack.c.l.b16 %v909
        %v943 = vunpack.c.l.b16 %v910
        %v944 = vunpack.c.l.b16 %v911
        %v945 = vunpack.c.l.b16 %v912
        %v946 = vunpack.c.l.b16 %v913
        %v947 = vunpack.c.l.b16 %v914
        %v948 = vunpack.c.l.b16 %v915
        %v949 = vunpack.c.l.b16 %v916
        %v950 = vunpack.c.l.b16 %v917
        %v951 = vunpack.c.l.b16 %v918
        %v952 = vpack.c.b16 %v937, %v936
        %v953 = vpack.c.b16 %v939, %v938
        %v954 = vpack.c.b16 %v941, %v940
        %v955 = vpack.c.b16 %v943, %v942
        %v956 = vpack.c.b16 %v945, %v944
        %v957 = vpack.c.b16 %v947, %v946
        %v958 = vpack.c.b16 %v949, %v948
        %v959 = vpack.c.b16 %v951, %v950
        %968 = vmatpush.bf16.msra.mxu0 %v959
        %969 = vmatpush.bf16.msra.mxu0 %v958
        %970 = vmatpush.bf16.msra.mxu0 %v957
        %971 = vmatpush.bf16.msra.mxu0 %v956
        %972 = vmatpush.bf16.msra.mxu0 %v955
        %973 = vmatpush.bf16.msra.mxu0 %v954
        %974 = vmatpush.bf16.msra.mxu0 %v953
        %975 = vmatpush.bf16.msra.mxu0 %v952
        %976 = vmatmul.bf16.gmra.mxu0 %v919
        %v977 = vpop.f32.mrf.mxu0
        %v978 = vadd.f32 0.0, %v977
        %v979 = vpop.f32.mrf.mxu0
        %v980 = vadd.f32 0.0, %v979
        %981 = vdwg.mxu0
        %v982 = vpack.c.bf16 %v978, %v978
        %v983 = vpack.c.bf16 %v980, %v980
        %v984 = vld [vmem:[#allocation2] sm:$0xff]
        %v985 = vld [vmem:[#allocation2 + $0x8] sm:$0xff]
        %v986 = vld [vmem:[#allocation2 + $0x10] sm:$0xff]
        %v987 = vld [vmem:[#allocation2 + $0x18] sm:$0xff]
        %v988 = vld [vmem:[#allocation2 + $0x20] sm:$0xff]
        %v989 = vld [vmem:[#allocation2 + $0x28] sm:$0xff]
        %v990 = vld [vmem:[#allocation2 + $0x30] sm:$0xff]
        %v991 = vld [vmem:[#allocation2 + $0x38] sm:$0xff]
        %v992 = vld [vmem:[#allocation2 + $0x40] sm:$0xff]
        %v993 = vld [vmem:[#allocation2 + $0x48] sm:$0xff]
        %v994 = vld [vmem:[#allocation2 + $0x50] sm:$0xff]
        %v995 = vld [vmem:[#allocation2 + $0x58] sm:$0xff]
        %v996 = vld [vmem:[#allocation2 + $0x60] sm:$0xff]
        %v997 = vld [vmem:[#allocation2 + $0x68] sm:$0xff]
        %v998 = vld [vmem:[#allocation2 + $0x70] sm:$0xff]
        %v999 = vld [vmem:[#allocation2 + $0x78] sm:$0xff]
        %v1002 = vunpack.c.l.b16 %v982
        %v1003 = vunpack.c.l.b16 %v983
        %v1004 = vpack.c.b16 %v1003, %v1002
        %v1021 = vunpack.c.l.b16 %v984
        %v1022 = vunpack.c.l.b16 %v985
        %v1023 = vunpack.c.l.b16 %v986
        %v1024 = vunpack.c.l.b16 %v987
        %v1025 = vunpack.c.l.b16 %v988
        %v1026 = vunpack.c.l.b16 %v989
        %v1027 = vunpack.c.l.b16 %v990
        %v1028 = vunpack.c.l.b16 %v991
        %v1029 = vunpack.c.l.b16 %v992
        %v1030 = vunpack.c.l.b16 %v993
        %v1031 = vunpack.c.l.b16 %v994
        %v1032 = vunpack.c.l.b16 %v995
        %v1033 = vunpack.c.l.b16 %v996
        %v1034 = vunpack.c.l.b16 %v997
        %v1035 = vunpack.c.l.b16 %v998
        %v1036 = vunpack.c.l.b16 %v999
        %v1037 = vpack.c.b16 %v1022, %v1021
        %v1038 = vpack.c.b16 %v1024, %v1023
        %v1039 = vpack.c.b16 %v1026, %v1025
        %v1040 = vpack.c.b16 %v1028, %v1027
        %v1041 = vpack.c.b16 %v1030, %v1029
        %v1042 = vpack.c.b16 %v1032, %v1031
        %v1043 = vpack.c.b16 %v1034, %v1033
        %v1044 = vpack.c.b16 %v1036, %v1035
        %vm1045 = vcmask 261120
        %v1047 = vsel %vm1045, %v1004, 0
        %v1050 = vsel %vm1045, %v1037, 0
        %v1053 = vsel %vm1045, %v1038, 0
        %v1056 = vsel %vm1045, %v1039, 0
        %v1059 = vsel %vm1045, %v1040, 0
        %v1062 = vsel %vm1045, %v1041, 0
        %v1065 = vsel %vm1045, %v1042, 0
        %v1068 = vsel %vm1045, %v1043, 0
        %v1071 = vsel %vm1045, %v1044, 0
        %1073 = vmatpush.bf16.xpose.msra.mxu0 %v1071
        %1074 = vmatpush.bf16.xpose.msra.mxu0 %v1068
        %1075 = vmatpush.bf16.xpose.msra.mxu0 %v1065
        %1076 = vmatpush.bf16.xpose.msra.mxu0 %v1062
        %1077 = vmatpush.bf16.xpose.msra.mxu0 %v1059
        %1078 = vmatpush.bf16.xpose.msra.mxu0 %v1056
        %1079 = vmatpush.bf16.xpose.msra.mxu0 %v1053
        %1080 = vmatpush.bf16.xpose.msra.mxu0 %v1050
        %1081 = vmatmul.bf16.gmra.mxu0 %v1047
        %v1082 = vpop.f32.mrf.mxu0
        %v1083 = vadd.f32 0.0, %v1082
        %v1084 = vpop.f32.mrf.mxu0
        %v1085 = vadd.f32 0.0, %v1084
        %1086 = vdwg.mxu0
        %1087 = vmax.xlane.f32.xlu0 %v1083
        %v1088 = vpop.xlane.xlu0 %1087
        %1089 = vmax.xlane.f32.xlu0 %v1085
        %v1090 = vpop.xlane.xlu0 %1089
        %v1091 = vsub.f32 %v1083, %v1088
        %v1092 = vsub.f32 %v1085, %v1090
        %v1093 = vmul.f32 %v1091, 1.442695
        %v1094 = vpow.pop %v1093
        %v1095 = vmul.f32 %v1092, 1.442695
        %v1096 = vpow.pop %v1095
        %1097 = vadd.xlane.f32.xlu0 %v1094
        %v1098 = vpop.xlane.xlu0 %1097
        %1099 = vadd.xlane.f32.xlu0 %v1096
        %v1100 = vpop.xlane.xlu0 %1099
        %v1101 = vrcp.pop %v1098
        %v1102 = vmul.f32 %v1098, %v1101
        %v1103 = vsub.f32 1.0, %v1102
        %v1104 = vmul.f32 %v1101, %v1103
        %v1105 = vadd.f32 %v1101, %v1104
        %vm1106 = vweird.f32 %v1098
        %vm1107 = vweird.f32 %v1101
        %vm1108 = vmor %vm1106, %vm1107
        %v1109 = vsel %vm1108, %v1101, %v1105
        %v1110 = vand.u32 2147483647, %v1098
        %vm1111 = vcmp.eq.f32.partialorder %v1110, 8.507059e+37
        %v1112 = vand.u32 %v1098, 2147483648
        %v1113 = vor.u32 1.1754944e-38, %v1112
        %v1114 = vsel %vm1111, %v1113, %v1109
        %v1115 = vmul.f32 %v1094, %v1114
        %v1116 = vrcp.pop %v1100
        %v1117 = vmul.f32 %v1100, %v1116
        %v1118 = vsub.f32 1.0, %v1117
        %v1119 = vmul.f32 %v1116, %v1118
        %v1120 = vadd.f32 %v1116, %v1119
        %vm1121 = vweird.f32 %v1100
        %vm1122 = vweird.f32 %v1116
        %vm1123 = vmor %vm1121, %vm1122
        %v1124 = vsel %vm1123, %v1116, %v1120
        %v1125 = vand.u32 2147483647, %v1100
        %vm1126 = vcmp.eq.f32.partialorder %v1125, 8.507059e+37
        %v1127 = vand.u32 %v1100, 2147483648
        %v1128 = vor.u32 1.1754944e-38, %v1127
        %v1129 = vsel %vm1126, %v1128, %v1124
        %v1130 = vmul.f32 %v1096, %v1129
        %1131 = vst [vmem:[%s642] sm:$0xff] %v1115
        %1132 = vst [vmem:[%s642 + $0x8] sm:$0xff] %v1130
        %v1133 = vpack.c.bf16 %v1130, %v1115
        %v1134 = vunpack.c.h.b16 %v984
        %v1135 = vunpack.c.h.b16 %v985
        %v1136 = vunpack.c.h.b16 %v986
        %v1137 = vunpack.c.h.b16 %v987
        %v1138 = vunpack.c.h.b16 %v988
        %v1139 = vunpack.c.h.b16 %v989
        %v1140 = vunpack.c.h.b16 %v990
        %v1141 = vunpack.c.h.b16 %v991
        %v1142 = vunpack.c.h.b16 %v992
        %v1143 = vunpack.c.h.b16 %v993
        %v1144 = vunpack.c.h.b16 %v994
        %v1145 = vunpack.c.h.b16 %v995
        %v1146 = vunpack.c.h.b16 %v996
        %v1147 = vunpack.c.h.b16 %v997
        %v1148 = vunpack.c.h.b16 %v998
        %v1149 = vunpack.c.h.b16 %v999
        %v1150 = vpack.c.b16 %v1135, %v1134
        %v1151 = vpack.c.b16 %v1137, %v1136
        %v1152 = vpack.c.b16 %v1139, %v1138
        %v1153 = vpack.c.b16 %v1141, %v1140
        %v1154 = vpack.c.b16 %v1143, %v1142
        %v1155 = vpack.c.b16 %v1145, %v1144
        %v1156 = vpack.c.b16 %v1147, %v1146
        %v1157 = vpack.c.b16 %v1149, %v1148
        %1166 = vmatpush.bf16.msra.mxu0 %v1157
        %1167 = vmatpush.bf16.msra.mxu0 %v1156
        %1168 = vmatpush.bf16.msra.mxu0 %v1155
        %1169 = vmatpush.bf16.msra.mxu0 %v1154
        %1170 = vmatpush.bf16.msra.mxu0 %v1153
        %1171 = vmatpush.bf16.msra.mxu0 %v1152
        %1172 = vmatpush.bf16.msra.mxu0 %v1151
        %1173 = vmatpush.bf16.msra.mxu0 %v1150
        %1174 = vmatmul.bf16.gmra.mxu0 %v1133
        %v1175 = vpop.f32.mrf.mxu0
        %v1176 = vadd.f32 0.0, %v1175
        %v1177 = vpop.f32.mrf.mxu0
        %v1178 = vadd.f32 0.0, %v1177
        %1179 = vdwg.mxu0
        %v1180 = vld [vmem:[#allocation11] sm:$0xf]
        %v1181 = vld [vmem:[#allocation11 + $0x4] sm:$0xf]
        %v1182 = vld [vmem:[#allocation11 + $0x8] sm:$0xf]
        %v1183 = vld [vmem:[#allocation11 + $0xc] sm:$0xf]
        %v1184 = vpack.c.bf16 %v1178, %v1176
        %v1189 = vunpack.c.l.b16 %v1180
        %v1190 = vunpack.c.l.b16 %v1181
        %v1191 = vunpack.c.l.b16 %v1182
        %v1192 = vunpack.c.l.b16 %v1183
        %v1193 = vpack.c.b16 %v1190, %v1189
        %v1194 = vpack.c.b16 %v1192, %v1191
        %v1198 = vsel %vm1045, %v1184, 0
        %1200 = vmatpush.bf16.msra.mxu0 0
        %1201 = vmatpush.bf16.msra.mxu0 0
        %1202 = vmatpush.bf16.msra.mxu0 0
        %1203 = vmatpush.bf16.msra.mxu0 0
        %1204 = vmatpush.bf16.msra.mxu0 0
        %1205 = vmatpush.bf16.msra.mxu0 0
        %1206 = vmatpush.bf16.msra.mxu0 %v1194
        %1207 = vmatpush.bf16.msra.mxu0 %v1193
        %1208 = vmatmul.bf16.gmra.mxu0 %v1198
        %v1209 = vpop.f32.mrf.mxu0
        %v1210 = vadd.f32 0.0, %v1209
        %v1211 = vpop.f32.mrf.mxu0
        %v1212 = vadd.f32 0.0, %v1211
        %1213 = vdwg.mxu0
        %v1214 = vadd.f32 %v901, %v1210
        %v1215 = vadd.f32 %v902, %v1212
        %1216 = vrot.lane.b32.xlu0 %v1004, 96
        %v1217 = vpop.permute.xlu0 %1216
        %1218 = vrot.lane.b32.xlu0 %v1037, 96
        %v1219 = vpop.permute.xlu0 %1218
        %1220 = vrot.lane.b32.xlu0 %v1038, 96
        %v1221 = vpop.permute.xlu0 %1220
        %1222 = vrot.lane.b32.xlu0 %v1039, 96
        %v1223 = vpop.permute.xlu0 %1222
        %1224 = vrot.lane.b32.xlu0 %v1040, 96
        %v1225 = vpop.permute.xlu0 %1224
        %1226 = vrot.lane.b32.xlu0 %v1041, 96
        %v1227 = vpop.permute.xlu0 %1226
        %1228 = vrot.lane.b32.xlu0 %v1042, 96
        %v1229 = vpop.permute.xlu0 %1228
        %1230 = vrot.lane.b32.xlu0 %v1043, 96
        %v1231 = vpop.permute.xlu0 %1230
        %1232 = vrot.lane.b32.xlu0 %v1044, 96
        %v1233 = vpop.permute.xlu0 %1232
        %v1235 = vsel %vm1045, %v1217, 0
        %v1238 = vsel %vm1045, %v1219, 0
        %v1241 = vsel %vm1045, %v1221, 0
        %v1244 = vsel %vm1045, %v1223, 0
        %v1247 = vsel %vm1045, %v1225, 0
        %v1250 = vsel %vm1045, %v1227, 0
        %v1253 = vsel %vm1045, %v1229, 0
        %v1256 = vsel %vm1045, %v1231, 0
        %v1259 = vsel %vm1045, %v1233, 0
        %1261 = vmatpush.bf16.xpose.msra.mxu0 %v1259
        %1262 = vmatpush.bf16.xpose.msra.mxu0 %v1256
        %1263 = vmatpush.bf16.xpose.msra.mxu0 %v1253
        %1264 = vmatpush.bf16.xpose.msra.mxu0 %v1250
        %1265 = vmatpush.bf16.xpose.msra.mxu0 %v1247
        %1266 = vmatpush.bf16.xpose.msra.mxu0 %v1244
        %1267 = vmatpush.bf16.xpose.msra.mxu0 %v1241
        %1268 = vmatpush.bf16.xpose.msra.mxu0 %v1238
        %1269 = vmatmul.bf16.gmra.mxu0 %v1235
        %v1270 = vpop.f32.mrf.mxu0
        %v1271 = vadd.f32 0.0, %v1270
        %v1272 = vpop.f32.mrf.mxu0
        %v1273 = vadd.f32 0.0, %v1272
        %1274 = vdwg.mxu0
        %1275 = vmax.xlane.f32.xlu0 %v1271
        %v1276 = vpop.xlane.xlu0 %1275
        %1277 = vmax.xlane.f32.xlu0 %v1273
        %v1278 = vpop.xlane.xlu0 %1277
        %v1279 = vsub.f32 %v1271, %v1276
        %v1280 = vsub.f32 %v1273, %v1278
        %v1281 = vmul.f32 %v1279, 1.442695
        %v1282 = vpow.pop %v1281
        %v1283 = vmul.f32 %v1280, 1.442695
        %v1284 = vpow.pop %v1283
        %1285 = vadd.xlane.f32.xlu0 %v1282
        %v1286 = vpop.xlane.xlu0 %1285
        %1287 = vadd.xlane.f32.xlu0 %v1284
        %v1288 = vpop.xlane.xlu0 %1287
        %v1289 = vrcp.pop %v1286
        %v1290 = vmul.f32 %v1286, %v1289
        %v1291 = vsub.f32 1.0, %v1290
        %v1292 = vmul.f32 %v1289, %v1291
        %v1293 = vadd.f32 %v1289, %v1292
        %vm1294 = vweird.f32 %v1286
        %vm1295 = vweird.f32 %v1289
        %vm1296 = vmor %vm1294, %vm1295
        %v1297 = vsel %vm1296, %v1289, %v1293
        %v1298 = vand.u32 2147483647, %v1286
        %vm1299 = vcmp.eq.f32.partialorder %v1298, 8.507059e+37
        %v1300 = vand.u32 %v1286, 2147483648
        %v1301 = vor.u32 1.1754944e-38, %v1300
        %v1302 = vsel %vm1299, %v1301, %v1297
        %v1303 = vmul.f32 %v1282, %v1302
        %v1304 = vrcp.pop %v1288
        %v1305 = vmul.f32 %v1288, %v1304
        %v1306 = vsub.f32 1.0, %v1305
        %v1307 = vmul.f32 %v1304, %v1306
        %v1308 = vadd.f32 %v1304, %v1307
        %vm1309 = vweird.f32 %v1288
        %vm1310 = vweird.f32 %v1304
        %vm1311 = vmor %vm1309, %vm1310
        %v1312 = vsel %vm1311, %v1304, %v1308
        %v1313 = vand.u32 2147483647, %v1288
        %vm1314 = vcmp.eq.f32.partialorder %v1313, 8.507059e+37
        %v1315 = vand.u32 %v1288, 2147483648
        %v1316 = vor.u32 1.1754944e-38, %v1315
        %v1317 = vsel %vm1314, %v1316, %v1312
        %v1318 = vmul.f32 %v1284, %v1317
        %s1319 = scalar_lea.vmem %s642, 16 [#allocation16]
        %1320 = vst [vmem:[%s1319] sm:$0xff] %v1303
        %1321 = vst [vmem:[%s1319 + $0x8] sm:$0xff] %v1318
        %v1322 = vpack.c.bf16 %v1318, %v1303
        %1323 = vrot.lane.b32.xlu0 %v1150, 96
        %v1324 = vpop.permute.xlu0 %1323
        %1325 = vrot.lane.b32.xlu0 %v1151, 96
        %v1326 = vpop.permute.xlu0 %1325
        %1327 = vrot.lane.b32.xlu0 %v1152, 96
        %v1328 = vpop.permute.xlu0 %1327
        %1329 = vrot.lane.b32.xlu0 %v1153, 96
        %v1330 = vpop.permute.xlu0 %1329
        %1331 = vrot.lane.b32.xlu0 %v1154, 96
        %v1332 = vpop.permute.xlu0 %1331
        %1333 = vrot.lane.b32.xlu0 %v1155, 96
        %v1334 = vpop.permute.xlu0 %1333
        %1335 = vrot.lane.b32.xlu0 %v1156, 96
        %v1336 = vpop.permute.xlu0 %1335
        %1337 = vrot.lane.b32.xlu0 %v1157, 96
        %v1338 = vpop.permute.xlu0 %1337
        %1347 = vmatpush.bf16.msra.mxu0 %v1338
        %1348 = vmatpush.bf16.msra.mxu0 %v1336
        %1349 = vmatpush.bf16.msra.mxu0 %v1334
        %1350 = vmatpush.bf16.msra.mxu0 %v1332
        %1351 = vmatpush.bf16.msra.mxu0 %v1330
        %1352 = vmatpush.bf16.msra.mxu0 %v1328
        %1353 = vmatpush.bf16.msra.mxu0 %v1326
        %1354 = vmatpush.bf16.msra.mxu0 %v1324
        %1355 = vmatmul.bf16.gmra.mxu0 %v1322
        %v1356 = vpop.f32.mrf.mxu0
        %v1357 = vadd.f32 0.0, %v1356
        %v1358 = vpop.f32.mrf.mxu0
        %v1359 = vadd.f32 0.0, %v1358
        %1360 = vdwg.mxu0
        %v1361 = vld [vmem:[#allocation11 + $0x10] sm:$0xf]
        %v1362 = vld [vmem:[#allocation11 + $0x14] sm:$0xf]
        %v1363 = vld [vmem:[#allocation11 + $0x18] sm:$0xf]
        %v1364 = vld [vmem:[#allocation11 + $0x1c] sm:$0xf]
        %v1365 = vpack.c.bf16 %v1359, %v1357
        %v1370 = vunpack.c.l.b16 %v1361
        %v1371 = vunpack.c.l.b16 %v1362
        %v1372 = vunpack.c.l.b16 %v1363
        %v1373 = vunpack.c.l.b16 %v1364
        %v1374 = vpack.c.b16 %v1371, %v1370
        %v1375 = vpack.c.b16 %v1373, %v1372
        %v1379 = vsel %vm1045, %v1365, 0
        %1381 = vmatpush.bf16.msra.mxu0 0
        %1382 = vmatpush.bf16.msra.mxu0 0
        %1383 = vmatpush.bf16.msra.mxu0 0
        %1384 = vmatpush.bf16.msra.mxu0 0
        %1385 = vmatpush.bf16.msra.mxu0 0
        %1386 = vmatpush.bf16.msra.mxu0 0
        %1387 = vmatpush.bf16.msra.mxu0 %v1375
        %1388 = vmatpush.bf16.msra.mxu0 %v1374
        %1389 = vmatmul.bf16.gmra.mxu0 %v1379
        %v1390 = vpop.f32.mrf.mxu0
        %v1391 = vadd.f32 0.0, %v1390
        %v1392 = vpop.f32.mrf.mxu0
        %v1393 = vadd.f32 0.0, %v1392
        %1394 = vdwg.mxu0
        %v1395 = vadd.f32 %v1214, %v1391
        %v1396 = vadd.f32 %v1215, %v1393
        %1397 = vrot.lane.b32.xlu0 %v1004, 64
        %v1398 = vpop.permute.xlu0 %1397
        %1399 = vrot.lane.b32.xlu0 %v1037, 64
        %v1400 = vpop.permute.xlu0 %1399
        %1401 = vrot.lane.b32.xlu0 %v1038, 64
        %v1402 = vpop.permute.xlu0 %1401
        %1403 = vrot.lane.b32.xlu0 %v1039, 64
        %v1404 = vpop.permute.xlu0 %1403
        %1405 = vrot.lane.b32.xlu0 %v1040, 64
        %v1406 = vpop.permute.xlu0 %1405
        %1407 = vrot.lane.b32.xlu0 %v1041, 64
        %v1408 = vpop.permute.xlu0 %1407
        %1409 = vrot.lane.b32.xlu0 %v1042, 64
        %v1410 = vpop.permute.xlu0 %1409
        %1411 = vrot.lane.b32.xlu0 %v1043, 64
        %v1412 = vpop.permute.xlu0 %1411
        %1413 = vrot.lane.b32.xlu0 %v1044, 64
        %v1414 = vpop.permute.xlu0 %1413
        %v1416 = vsel %vm1045, %v1398, 0
        %v1419 = vsel %vm1045, %v1400, 0
        %v1422 = vsel %vm1045, %v1402, 0
        %v1425 = vsel %vm1045, %v1404, 0
        %v1428 = vsel %vm1045, %v1406, 0
        %v1431 = vsel %vm1045, %v1408, 0
        %v1434 = vsel %vm1045, %v1410, 0
        %v1437 = vsel %vm1045, %v1412, 0
        %v1440 = vsel %vm1045, %v1414, 0
        %1442 = vmatpush.bf16.xpose.msra.mxu0 %v1440
        %1443 = vmatpush.bf16.xpose.msra.mxu0 %v1437
        %1444 = vmatpush.bf16.xpose.msra.mxu0 %v1434
        %1445 = vmatpush.bf16.xpose.msra.mxu0 %v1431
        %1446 = vmatpush.bf16.xpose.msra.mxu0 %v1428
        %1447 = vmatpush.bf16.xpose.msra.mxu0 %v1425
        %1448 = vmatpush.bf16.xpose.msra.mxu0 %v1422
        %1449 = vmatpush.bf16.xpose.msra.mxu0 %v1419
        %1450 = vmatmul.bf16.gmra.mxu0 %v1416
        %v1451 = vpop.f32.mrf.mxu0
        %v1452 = vadd.f32 0.0, %v1451
        %v1453 = vpop.f32.mrf.mxu0
        %v1454 = vadd.f32 0.0, %v1453
        %1455 = vdwg.mxu0
        %1456 = vmax.xlane.f32.xlu0 %v1452
        %v1457 = vpop.xlane.xlu0 %1456
        %1458 = vmax.xlane.f32.xlu0 %v1454
        %v1459 = vpop.xlane.xlu0 %1458
        %v1460 = vsub.f32 %v1452, %v1457
        %v1461 = vsub.f32 %v1454, %v1459
        %v1462 = vmul.f32 %v1460, 1.442695
        %v1463 = vpow.pop %v1462
        %v1464 = vmul.f32 %v1461, 1.442695
        %v1465 = vpow.pop %v1464
        %1466 = vadd.xlane.f32.xlu0 %v1463
        %v1467 = vpop.xlane.xlu0 %1466
        %1468 = vadd.xlane.f32.xlu0 %v1465
        %v1469 = vpop.xlane.xlu0 %1468
        %v1470 = vrcp.pop %v1467
        %v1471 = vmul.f32 %v1467, %v1470
        %v1472 = vsub.f32 1.0, %v1471
        %v1473 = vmul.f32 %v1470, %v1472
        %v1474 = vadd.f32 %v1470, %v1473
        %vm1475 = vweird.f32 %v1467
        %vm1476 = vweird.f32 %v1470
        %vm1477 = vmor %vm1475, %vm1476
        %v1478 = vsel %vm1477, %v1470, %v1474
        %v1479 = vand.u32 2147483647, %v1467
        %vm1480 = vcmp.eq.f32.partialorder %v1479, 8.507059e+37
        %v1481 = vand.u32 %v1467, 2147483648
        %v1482 = vor.u32 1.1754944e-38, %v1481
        %v1483 = vsel %vm1480, %v1482, %v1478
        %v1484 = vmul.f32 %v1463, %v1483
        %v1485 = vrcp.pop %v1469
        %v1486 = vmul.f32 %v1469, %v1485
        %v1487 = vsub.f32 1.0, %v1486
        %v1488 = vmul.f32 %v1485, %v1487
        %v1489 = vadd.f32 %v1485, %v1488
        %vm1490 = vweird.f32 %v1469
        %vm1491 = vweird.f32 %v1485
        %vm1492 = vmor %vm1490, %vm1491
        %v1493 = vsel %vm1492, %v1485, %v1489
        %v1494 = vand.u32 2147483647, %v1469
        %vm1495 = vcmp.eq.f32.partialorder %v1494, 8.507059e+37
        %v1496 = vand.u32 %v1469, 2147483648
        %v1497 = vor.u32 1.1754944e-38, %v1496
        %v1498 = vsel %vm1495, %v1497, %v1493
        %v1499 = vmul.f32 %v1465, %v1498
        %s1500 = scalar_lea.vmem %s642, 32 [#allocation16]
        %1501 = vst [vmem:[%s1500] sm:$0xff] %v1484
        %1502 = vst [vmem:[%s1500 + $0x8] sm:$0xff] %v1499
        %v1503 = vpack.c.bf16 %v1499, %v1484
        %1504 = vrot.lane.b32.xlu0 %v1150, 64
        %v1505 = vpop.permute.xlu0 %1504
        %1506 = vrot.lane.b32.xlu0 %v1151, 64
        %v1507 = vpop.permute.xlu0 %1506
        %1508 = vrot.lane.b32.xlu0 %v1152, 64
        %v1509 = vpop.permute.xlu0 %1508
        %1510 = vrot.lane.b32.xlu0 %v1153, 64
        %v1511 = vpop.permute.xlu0 %1510
        %1512 = vrot.lane.b32.xlu0 %v1154, 64
        %v1513 = vpop.permute.xlu0 %1512
        %1514 = vrot.lane.b32.xlu0 %v1155, 64
        %v1515 = vpop.permute.xlu0 %1514
        %1516 = vrot.lane.b32.xlu0 %v1156, 64
        %v1517 = vpop.permute.xlu0 %1516
        %1518 = vrot.lane.b32.xlu0 %v1157, 64
        %v1519 = vpop.permute.xlu0 %1518
        %1528 = vmatpush.bf16.msra.mxu0 %v1519
        %1529 = vmatpush.bf16.msra.mxu0 %v1517
        %1530 = vmatpush.bf16.msra.mxu0 %v1515
        %1531 = vmatpush.bf16.msra.mxu0 %v1513
        %1532 = vmatpush.bf16.msra.mxu0 %v1511
        %1533 = vmatpush.bf16.msra.mxu0 %v1509
        %1534 = vmatpush.bf16.msra.mxu0 %v1507
        %1535 = vmatpush.bf16.msra.mxu0 %v1505
        %1536 = vmatmul.bf16.gmra.mxu0 %v1503
        %v1537 = vpop.f32.mrf.mxu0
        %v1538 = vadd.f32 0.0, %v1537
        %v1539 = vpop.f32.mrf.mxu0
        %v1540 = vadd.f32 0.0, %v1539
        %1541 = vdwg.mxu0
        %v1542 = vld [vmem:[#allocation11 + $0x20] sm:$0xf]
        %v1543 = vld [vmem:[#allocation11 + $0x24] sm:$0xf]
        %v1544 = vld [vmem:[#allocation11 + $0x28] sm:$0xf]
        %v1545 = vld [vmem:[#allocation11 + $0x2c] sm:$0xf]
        %v1546 = vpack.c.bf16 %v1540, %v1538
        %v1551 = vunpack.c.l.b16 %v1542
        %v1552 = vunpack.c.l.b16 %v1543
        %v1553 = vunpack.c.l.b16 %v1544
        %v1554 = vunpack.c.l.b16 %v1545
        %v1555 = vpack.c.b16 %v1552, %v1551
        %v1556 = vpack.c.b16 %v1554, %v1553
        %v1560 = vsel %vm1045, %v1546, 0
        %1562 = vmatpush.bf16.msra.mxu0 0
        %1563 = vmatpush.bf16.msra.mxu0 0
        %1564 = vmatpush.bf16.msra.mxu0 0
        %1565 = vmatpush.bf16.msra.mxu0 0
        %1566 = vmatpush.bf16.msra.mxu0 0
        %1567 = vmatpush.bf16.msra.mxu0 0
        %1568 = vmatpush.bf16.msra.mxu0 %v1556
        %1569 = vmatpush.bf16.msra.mxu0 %v1555
        %1570 = vmatmul.bf16.gmra.mxu0 %v1560
        %v1571 = vpop.f32.mrf.mxu0
        %v1572 = vadd.f32 0.0, %v1571
        %v1573 = vpop.f32.mrf.mxu0
        %v1574 = vadd.f32 0.0, %v1573
        %1575 = vdwg.mxu0
        %v1576 = vadd.f32 %v1395, %v1572
        %v1577 = vadd.f32 %v1396, %v1574
        %1578 = vrot.lane.b32.xlu0 %v1004, 32
        %v1579 = vpop.permute.xlu0 %1578
        %1580 = vrot.lane.b32.xlu0 %v1037, 32
        %v1581 = vpop.permute.xlu0 %1580
        %1582 = vrot.lane.b32.xlu0 %v1038, 32
        %v1583 = vpop.permute.xlu0 %1582
        %1584 = vrot.lane.b32.xlu0 %v1039, 32
        %v1585 = vpop.permute.xlu0 %1584
        %1586 = vrot.lane.b32.xlu0 %v1040, 32
        %v1587 = vpop.permute.xlu0 %1586
        %1588 = vrot.lane.b32.xlu0 %v1041, 32
        %v1589 = vpop.permute.xlu0 %1588
        %1590 = vrot.lane.b32.xlu0 %v1042, 32
        %v1591 = vpop.permute.xlu0 %1590
        %1592 = vrot.lane.b32.xlu0 %v1043, 32
        %v1593 = vpop.permute.xlu0 %1592
        %1594 = vrot.lane.b32.xlu0 %v1044, 32
        %v1595 = vpop.permute.xlu0 %1594
        %v1597 = vsel %vm1045, %v1579, 0
        %v1600 = vsel %vm1045, %v1581, 0
        %v1603 = vsel %vm1045, %v1583, 0
        %v1606 = vsel %vm1045, %v1585, 0
        %v1609 = vsel %vm1045, %v1587, 0
        %v1612 = vsel %vm1045, %v1589, 0
        %v1615 = vsel %vm1045, %v1591, 0
        %v1618 = vsel %vm1045, %v1593, 0
        %v1621 = vsel %vm1045, %v1595, 0
        %1623 = vmatpush.bf16.xpose.msra.mxu0 %v1621
        %1624 = vmatpush.bf16.xpose.msra.mxu0 %v1618
        %1625 = vmatpush.bf16.xpose.msra.mxu0 %v1615
        %1626 = vmatpush.bf16.xpose.msra.mxu0 %v1612
        %1627 = vmatpush.bf16.xpose.msra.mxu0 %v1609
        %1628 = vmatpush.bf16.xpose.msra.mxu0 %v1606
        %1629 = vmatpush.bf16.xpose.msra.mxu0 %v1603
        %1630 = vmatpush.bf16.xpose.msra.mxu0 %v1600
        %1631 = vmatmul.bf16.gmra.mxu0 %v1597
        %v1632 = vpop.f32.mrf.mxu0
        %v1633 = vadd.f32 0.0, %v1632
        %v1634 = vpop.f32.mrf.mxu0
        %v1635 = vadd.f32 0.0, %v1634
        %1636 = vdwg.mxu0
        %1637 = vmax.xlane.f32.xlu0 %v1633
        %v1638 = vpop.xlane.xlu0 %1637
        %1639 = vmax.xlane.f32.xlu0 %v1635
        %v1640 = vpop.xlane.xlu0 %1639
        %v1641 = vsub.f32 %v1633, %v1638
        %v1642 = vsub.f32 %v1635, %v1640
        %v1643 = vmul.f32 %v1641, 1.442695
        %v1644 = vpow.pop %v1643
        %v1645 = vmul.f32 %v1642, 1.442695
        %v1646 = vpow.pop %v1645
        %1647 = vadd.xlane.f32.xlu0 %v1644
        %v1648 = vpop.xlane.xlu0 %1647
        %1649 = vadd.xlane.f32.xlu0 %v1646
        %v1650 = vpop.xlane.xlu0 %1649
        %v1651 = vrcp.pop %v1648
        %v1652 = vmul.f32 %v1648, %v1651
        %v1653 = vsub.f32 1.0, %v1652
        %v1654 = vmul.f32 %v1651, %v1653
        %v1655 = vadd.f32 %v1651, %v1654
        %vm1656 = vweird.f32 %v1648
        %vm1657 = vweird.f32 %v1651
        %vm1658 = vmor %vm1656, %vm1657
        %v1659 = vsel %vm1658, %v1651, %v1655
        %v1660 = vand.u32 2147483647, %v1648
        %vm1661 = vcmp.eq.f32.partialorder %v1660, 8.507059e+37
        %v1662 = vand.u32 %v1648, 2147483648
        %v1663 = vor.u32 1.1754944e-38, %v1662
        %v1664 = vsel %vm1661, %v1663, %v1659
        %v1665 = vmul.f32 %v1644, %v1664
        %v1666 = vrcp.pop %v1650
        %v1667 = vmul.f32 %v1650, %v1666
        %v1668 = vsub.f32 1.0, %v1667
        %v1669 = vmul.f32 %v1666, %v1668
        %v1670 = vadd.f32 %v1666, %v1669
        %vm1671 = vweird.f32 %v1650
        %vm1672 = vweird.f32 %v1666
        %vm1673 = vmor %vm1671, %vm1672
        %v1674 = vsel %vm1673, %v1666, %v1670
        %v1675 = vand.u32 2147483647, %v1650
        %vm1676 = vcmp.eq.f32.partialorder %v1675, 8.507059e+37
        %v1677 = vand.u32 %v1650, 2147483648
        %v1678 = vor.u32 1.1754944e-38, %v1677
        %v1679 = vsel %vm1676, %v1678, %v1674
        %v1680 = vmul.f32 %v1646, %v1679
        %s1681 = scalar_lea.vmem %s642, 48 [#allocation16]
        %1682 = vst [vmem:[%s1681] sm:$0xff] %v1665
        %1683 = vst [vmem:[%s1681 + $0x8] sm:$0xff] %v1680
        %v1684 = vpack.c.bf16 %v1680, %v1665
        %1685 = vrot.lane.b32.xlu0 %v1150, 32
        %v1686 = vpop.permute.xlu0 %1685
        %1687 = vrot.lane.b32.xlu0 %v1151, 32
        %v1688 = vpop.permute.xlu0 %1687
        %1689 = vrot.lane.b32.xlu0 %v1152, 32
        %v1690 = vpop.permute.xlu0 %1689
        %1691 = vrot.lane.b32.xlu0 %v1153, 32
        %v1692 = vpop.permute.xlu0 %1691
        %1693 = vrot.lane.b32.xlu0 %v1154, 32
        %v1694 = vpop.permute.xlu0 %1693
        %1695 = vrot.lane.b32.xlu0 %v1155, 32
        %v1696 = vpop.permute.xlu0 %1695
        %1697 = vrot.lane.b32.xlu0 %v1156, 32
        %v1698 = vpop.permute.xlu0 %1697
        %1699 = vrot.lane.b32.xlu0 %v1157, 32
        %v1700 = vpop.permute.xlu0 %1699
        %1709 = vmatpush.bf16.msra.mxu0 %v1700
        %1710 = vmatpush.bf16.msra.mxu0 %v1698
        %1711 = vmatpush.bf16.msra.mxu0 %v1696
        %1712 = vmatpush.bf16.msra.mxu0 %v1694
        %1713 = vmatpush.bf16.msra.mxu0 %v1692
        %1714 = vmatpush.bf16.msra.mxu0 %v1690
        %1715 = vmatpush.bf16.msra.mxu0 %v1688
        %1716 = vmatpush.bf16.msra.mxu0 %v1686
        %1717 = vmatmul.bf16.gmra.mxu0 %v1684
        %v1718 = vpop.f32.mrf.mxu0
        %v1719 = vadd.f32 0.0, %v1718
        %v1720 = vpop.f32.mrf.mxu0
        %v1721 = vadd.f32 0.0, %v1720
        %1722 = vdwg.mxu0
        %v1723 = vld [vmem:[#allocation11 + $0x30] sm:$0xf]
        %v1724 = vld [vmem:[#allocation11 + $0x34] sm:$0xf]
        %v1725 = vld [vmem:[#allocation11 + $0x38] sm:$0xf]
        %v1726 = vld [vmem:[#allocation11 + $0x3c] sm:$0xf]
        %v1727 = vpack.c.bf16 %v1721, %v1719
        %v1732 = vunpack.c.l.b16 %v1723
        %v1733 = vunpack.c.l.b16 %v1724
        %v1734 = vunpack.c.l.b16 %v1725
        %v1735 = vunpack.c.l.b16 %v1726
        %v1736 = vpack.c.b16 %v1733, %v1732
        %v1737 = vpack.c.b16 %v1735, %v1734
        %v1741 = vsel %vm1045, %v1727, 0
        %1743 = vmatpush.bf16.msra.mxu0 0
        %1744 = vmatpush.bf16.msra.mxu0 0
        %1745 = vmatpush.bf16.msra.mxu0 0
        %1746 = vmatpush.bf16.msra.mxu0 0
        %1747 = vmatpush.bf16.msra.mxu0 0
        %1748 = vmatpush.bf16.msra.mxu0 0
        %1749 = vmatpush.bf16.msra.mxu0 %v1737
        %1750 = vmatpush.bf16.msra.mxu0 %v1736
        %1751 = vmatmul.bf16.gmra.mxu0 %v1741
        %v1752 = vpop.f32.mrf.mxu0
        %v1753 = vadd.f32 0.0, %v1752
        %v1754 = vpop.f32.mrf.mxu0
        %v1755 = vadd.f32 0.0, %v1754
        %1756 = vdwg.mxu0
        %v1757 = vadd.f32 %v1576, %v1753
        %v1758 = vadd.f32 %v1577, %v1755
        %1759 = vadd.xlane.f32.xlu0 %v1757
        %v1760 = vpop.xlane.xlu0 %1759
        %1761 = vadd.xlane.f32.xlu0 %v1758
        %v1762 = vpop.xlane.xlu0 %1761
        %v1763 = vrcp.pop 128.0
        %v1764 = vmul.f32 128.0, %v1763
        %v1765 = vsub.f32 1.0, %v1764
        %v1766 = vmul.f32 %v1763, %v1765
        %v1767 = vadd.f32 %v1763, %v1766
        %vm1768 = vweird.f32 %v1763
        %v1769 = vsel %vm1768, %v1763, %v1767
        %v1770 = vmul.f32 %v1760, %v1769
        %v1771 = vmul.f32 %v1762, %v1769
        %v1772 = vsub.f32 %v1757, %v1770
        %v1773 = vsub.f32 %v1758, %v1771
        %v1774 = vmul.f32 %v1772, %v1772
        %v1775 = vmul.f32 %v1773, %v1773
        %1776 = vadd.xlane.f32.xlu0 %v1774
        %v1777 = vpop.xlane.xlu0 %1776
        %1778 = vadd.xlane.f32.xlu0 %v1775
        %v1779 = vpop.xlane.xlu0 %1778
        %v1780 = vmul.f32 %v1777, %v1769
        %v1781 = vmul.f32 %v1779, %v1769
        %v1782 = vadd.f32 %v1780, 1e-06
        %v1783 = vadd.f32 %v1781, 1e-06
        %v1784 = vrsqrt.pop %v1782
        %v1785 = vmul.f32 %v1784, %v1782
        %v1786 = vmul.f32 %v1785, %v1784
        %v1787 = vmul.f32 0.5, %v1786
        %v1788 = vsub.f32 1.5, %v1787
        %v1789 = vmul.f32 %v1784, %v1788
        %vm1790 = vweird.f32 %v1782
        %vm1791 = vweird.f32 %v1784
        %vm1792 = vmor %vm1790, %vm1791
        %v1793 = vsel %vm1792, %v1784, %v1789
        %v1794 = vrsqrt.pop %v1783
        %v1795 = vmul.f32 %v1794, %v1783
        %v1796 = vmul.f32 %v1795, %v1794
        %v1797 = vmul.f32 0.5, %v1796
        %v1798 = vsub.f32 1.5, %v1797
        %v1799 = vmul.f32 %v1794, %v1798
        %vm1800 = vweird.f32 %v1783
        %vm1801 = vweird.f32 %v1794
        %vm1802 = vmor %vm1800, %vm1801
        %v1803 = vsel %vm1802, %v1794, %v1799
        %v1804 = vmul.f32 %v1772, %v1793
        %v1805 = vmul.f32 %v1773, %v1803
        %v1806 = vld [vmem:[%s5] sm:$0x1]
        %v1808 = vperm.slane %v1806, 0
        %v1810 = vmul.f32 %v1804, %v1808
        %v1811 = vmul.f32 %v1805, %v1808
        %v1812 = vld [vmem:[%s6] sm:$0x1]
        %v1814 = vperm.slane %v1812, 0
        %v1816 = vadd.f32 %v1810, %v1814
        %v1817 = vadd.f32 %v1811, %v1814
        %v1818 = vld [vmem:[#allocation12] sm:$0xff]
        %v1819 = vld [vmem:[#allocation12 + $0x8] sm:$0xff]
        %v1820 = vld [vmem:[#allocation12 + $0x10] sm:$0xff]
        %v1821 = vld [vmem:[#allocation12 + $0x18] sm:$0xff]
        %v1822 = vld [vmem:[#allocation12 + $0x20] sm:$0xff]
        %v1823 = vld [vmem:[#allocation12 + $0x28] sm:$0xff]
        %v1824 = vld [vmem:[#allocation12 + $0x30] sm:$0xff]
        %v1825 = vld [vmem:[#allocation12 + $0x38] sm:$0xff]
        %v1826 = vld [vmem:[#allocation12 + $0x40] sm:$0xff]
        %v1827 = vld [vmem:[#allocation12 + $0x48] sm:$0xff]
        %v1828 = vld [vmem:[#allocation12 + $0x50] sm:$0xff]
        %v1829 = vld [vmem:[#allocation12 + $0x58] sm:$0xff]
        %v1830 = vld [vmem:[#allocation12 + $0x60] sm:$0xff]
        %v1831 = vld [vmem:[#allocation12 + $0x68] sm:$0xff]
        %v1832 = vld [vmem:[#allocation12 + $0x70] sm:$0xff]
        %v1833 = vld [vmem:[#allocation12 + $0x78] sm:$0xff]
        %v1834 = vpack.c.bf16 %v1817, %v1816
        %v1835 = vld [vmem:[%s8] sm:$0x3]
        %v1837 = vperm.slane %v1835, 0
        %v1838 = vperm.slane %v1835, 1
        %v1857 = vunpack.c.l.b16 %v1818
        %v1858 = vunpack.c.h.b16 %v1818
        %v1859 = vunpack.c.l.b16 %v1819
        %v1860 = vunpack.c.h.b16 %v1819
        %v1861 = vunpack.c.l.b16 %v1820
        %v1862 = vunpack.c.h.b16 %v1820
        %v1863 = vunpack.c.l.b16 %v1821
        %v1864 = vunpack.c.h.b16 %v1821
        %v1865 = vunpack.c.l.b16 %v1822
        %v1866 = vunpack.c.h.b16 %v1822
        %v1867 = vunpack.c.l.b16 %v1823
        %v1868 = vunpack.c.h.b16 %v1823
        %v1869 = vunpack.c.l.b16 %v1824
        %v1870 = vunpack.c.h.b16 %v1824
        %v1871 = vunpack.c.l.b16 %v1825
        %v1872 = vunpack.c.h.b16 %v1825
        %v1873 = vunpack.c.l.b16 %v1826
        %v1874 = vunpack.c.h.b16 %v1826
        %v1875 = vunpack.c.l.b16 %v1827
        %v1876 = vunpack.c.h.b16 %v1827
        %v1877 = vunpack.c.l.b16 %v1828
        %v1878 = vunpack.c.h.b16 %v1828
        %v1879 = vunpack.c.l.b16 %v1829
        %v1880 = vunpack.c.h.b16 %v1829
        %v1881 = vunpack.c.l.b16 %v1830
        %v1882 = vunpack.c.h.b16 %v1830
        %v1883 = vunpack.c.l.b16 %v1831
        %v1884 = vunpack.c.h.b16 %v1831
        %v1885 = vunpack.c.l.b16 %v1832
        %v1886 = vunpack.c.h.b16 %v1832
        %v1887 = vunpack.c.l.b16 %v1833
        %v1888 = vunpack.c.h.b16 %v1833
        %v1889 = vpack.c.b16 %v1859, %v1857
        %v1890 = vpack.c.b16 %v1860, %v1858
        %v1891 = vpack.c.b16 %v1863, %v1861
        %v1892 = vpack.c.b16 %v1864, %v1862
        %v1893 = vpack.c.b16 %v1867, %v1865
        %v1894 = vpack.c.b16 %v1868, %v1866
        %v1895 = vpack.c.b16 %v1871, %v1869
        %v1896 = vpack.c.b16 %v1872, %v1870
        %v1897 = vpack.c.b16 %v1875, %v1873
        %v1898 = vpack.c.b16 %v1876, %v1874
        %v1899 = vpack.c.b16 %v1879, %v1877
        %v1900 = vpack.c.b16 %v1880, %v1878
        %v1901 = vpack.c.b16 %v1883, %v1881
        %v1902 = vpack.c.b16 %v1884, %v1882
        %v1903 = vpack.c.b16 %v1887, %v1885
        %v1904 = vpack.c.b16 %v1888, %v1886
        %1921 = vmatpush.bf16.msra.mxu0 %v1903
        %1922 = vmatpush.bf16.msra.mxu0 %v1901
        %1923 = vmatpush.bf16.msra.mxu0 %v1899
        %1924 = vmatpush.bf16.msra.mxu0 %v1897
        %1925 = vmatpush.bf16.msra.mxu0 %v1895
        %1926 = vmatpush.bf16.msra.mxu0 %v1893
        %1927 = vmatpush.bf16.msra.mxu0 %v1891
        %1928 = vmatpush.bf16.msra.mxu0 %v1889
        %1929 = vmatmul.bf16.gmra.mxu0 %v1834
        %v1930 = vpop.f32.mrf.mxu0
        %v1931 = vadd.f32 %v1837, %v1930
        %v1932 = vpop.f32.mrf.mxu0
        %v1933 = vadd.f32 %v1837, %v1932
        %1934 = vdwg.mxu0
        %1935 = vmatpush.bf16.msra.mxu0 %v1904
        %1936 = vmatpush.bf16.msra.mxu0 %v1902
        %1937 = vmatpush.bf16.msra.mxu0 %v1900
        %1938 = vmatpush.bf16.msra.mxu0 %v1898
        %1939 = vmatpush.bf16.msra.mxu0 %v1896
        %1940 = vmatpush.bf16.msra.mxu0 %v1894
        %1941 = vmatpush.bf16.msra.mxu0 %v1892
        %1942 = vmatpush.bf16.msra.mxu0 %v1890
        %1943 = vmatmul.bf16.gmra.mxu0 %v1834
        %v1944 = vpop.f32.mrf.mxu0
        %v1945 = vadd.f32 %v1838, %v1944
        %v1946 = vpop.f32.mrf.mxu0
        %v1947 = vadd.f32 %v1838, %v1946
        %1948 = vdwg.mxu0
        %v1949 = vmax.f32 %v1931, 0.0
        %v1950 = vmax.f32 %v1945, 0.0
        %v1951 = vmax.f32 %v1933, 0.0
        %v1952 = vmax.f32 %v1947, 0.0
        %v1953 = vld [vmem:[#allocation14] sm:$0xf]
        %v1954 = vld [vmem:[#allocation14 + $0x4] sm:$0xf]
        %v1955 = vld [vmem:[#allocation14 + $0x8] sm:$0xf]
        %v1956 = vld [vmem:[#allocation14 + $0xc] sm:$0xf]
        %v1957 = vld [vmem:[#allocation14 + $0x10] sm:$0xf]
        %v1958 = vld [vmem:[#allocation14 + $0x14] sm:$0xf]
        %v1959 = vld [vmem:[#allocation14 + $0x18] sm:$0xf]
        %v1960 = vld [vmem:[#allocation14 + $0x1c] sm:$0xf]
        %v1961 = vld [vmem:[#allocation14 + $0x20] sm:$0xf]
        %v1962 = vld [vmem:[#allocation14 + $0x24] sm:$0xf]
        %v1963 = vld [vmem:[#allocation14 + $0x28] sm:$0xf]
        %v1964 = vld [vmem:[#allocation14 + $0x2c] sm:$0xf]
        %v1965 = vld [vmem:[#allocation14 + $0x30] sm:$0xf]
        %v1966 = vld [vmem:[#allocation14 + $0x34] sm:$0xf]
        %v1967 = vld [vmem:[#allocation14 + $0x38] sm:$0xf]
        %v1968 = vld [vmem:[#allocation14 + $0x3c] sm:$0xf]
        %v1969 = vld [vmem:[#allocation14 + $0x40] sm:$0xf]
        %v1970 = vld [vmem:[#allocation14 + $0x44] sm:$0xf]
        %v1971 = vld [vmem:[#allocation14 + $0x48] sm:$0xf]
        %v1972 = vld [vmem:[#allocation14 + $0x4c] sm:$0xf]
        %v1973 = vld [vmem:[#allocation14 + $0x50] sm:$0xf]
        %v1974 = vld [vmem:[#allocation14 + $0x54] sm:$0xf]
        %v1975 = vld [vmem:[#allocation14 + $0x58] sm:$0xf]
        %v1976 = vld [vmem:[#allocation14 + $0x5c] sm:$0xf]
        %v1977 = vld [vmem:[#allocation14 + $0x60] sm:$0xf]
        %v1978 = vld [vmem:[#allocation14 + $0x64] sm:$0xf]
        %v1979 = vld [vmem:[#allocation14 + $0x68] sm:$0xf]
        %v1980 = vld [vmem:[#allocation14 + $0x6c] sm:$0xf]
        %v1981 = vld [vmem:[#allocation14 + $0x70] sm:$0xf]
        %v1982 = vld [vmem:[#allocation14 + $0x74] sm:$0xf]
        %v1983 = vld [vmem:[#allocation14 + $0x78] sm:$0xf]
        %v1984 = vld [vmem:[#allocation14 + $0x7c] sm:$0xf]
        %v1985 = vpack.c.bf16 %v1951, %v1949
        %v1986 = vpack.c.bf16 %v1952, %v1950
        %v1987 = vld [vmem:[%s10] sm:$0x1]
        %v1989 = vperm.slane %v1987, 0
        %v2023 = vunpack.c.l.b16 %v1953
        %v2024 = vunpack.c.l.b16 %v1954
        %v2025 = vunpack.c.l.b16 %v1955
        %v2026 = vunpack.c.l.b16 %v1956
        %v2027 = vunpack.c.l.b16 %v1957
        %v2028 = vunpack.c.l.b16 %v1958
        %v2029 = vunpack.c.l.b16 %v1959
        %v2030 = vunpack.c.l.b16 %v1960
        %v2031 = vunpack.c.l.b16 %v1961
        %v2032 = vunpack.c.l.b16 %v1962
        %v2033 = vunpack.c.l.b16 %v1963
        %v2034 = vunpack.c.l.b16 %v1964
        %v2035 = vunpack.c.l.b16 %v1965
        %v2036 = vunpack.c.l.b16 %v1966
        %v2037 = vunpack.c.l.b16 %v1967
        %v2038 = vunpack.c.l.b16 %v1968
        %v2039 = vunpack.c.l.b16 %v1969
        %v2040 = vunpack.c.l.b16 %v1970
        %v2041 = vunpack.c.l.b16 %v1971
        %v2042 = vunpack.c.l.b16 %v1972
        %v2043 = vunpack.c.l.b16 %v1973
        %v2044 = vunpack.c.l.b16 %v1974
        %v2045 = vunpack.c.l.b16 %v1975
        %v2046 = vunpack.c.l.b16 %v1976
        %v2047 = vunpack.c.l.b16 %v1977
        %v2048 = vunpack.c.l.b16 %v1978
        %v2049 = vunpack.c.l.b16 %v1979
        %v2050 = vunpack.c.l.b16 %v1980
        %v2051 = vunpack.c.l.b16 %v1981
        %v2052 = vunpack.c.l.b16 %v1982
        %v2053 = vunpack.c.l.b16 %v1983
        %v2054 = vunpack.c.l.b16 %v1984
        %v2055 = vpack.c.b16 %v2024, %v2023
        %v2056 = vpack.c.b16 %v2026, %v2025
        %v2057 = vpack.c.b16 %v2028, %v2027
        %v2058 = vpack.c.b16 %v2030, %v2029
        %v2059 = vpack.c.b16 %v2032, %v2031
        %v2060 = vpack.c.b16 %v2034, %v2033
        %v2061 = vpack.c.b16 %v2036, %v2035
        %v2062 = vpack.c.b16 %v2038, %v2037
        %v2063 = vpack.c.b16 %v2040, %v2039
        %v2064 = vpack.c.b16 %v2042, %v2041
        %v2065 = vpack.c.b16 %v2044, %v2043
        %v2066 = vpack.c.b16 %v2046, %v2045
        %v2067 = vpack.c.b16 %v2048, %v2047
        %v2068 = vpack.c.b16 %v2050, %v2049
        %v2069 = vpack.c.b16 %v2052, %v2051
        %v2070 = vpack.c.b16 %v2054, %v2053
        %2087 = vmatpush.bf16.msra.mxu0 %v2062
        %2088 = vmatpush.bf16.msra.mxu0 %v2061
        %2089 = vmatpush.bf16.msra.mxu0 %v2060
        %2090 = vmatpush.bf16.msra.mxu0 %v2059
        %2091 = vmatpush.bf16.msra.mxu0 %v2058
        %2092 = vmatpush.bf16.msra.mxu0 %v2057
        %2093 = vmatpush.bf16.msra.mxu0 %v2056
        %2094 = vmatpush.bf16.msra.mxu0 %v2055
        %2095 = vmatmul.bf16.gmra.mxu0 %v1985
        %v2096 = vpop.f32.mrf.mxu0
        %v2097 = vadd.f32 %v1989, %v2096
        %v2098 = vpop.f32.mrf.mxu0
        %v2099 = vadd.f32 %v1989, %v2098
        %2100 = vdwg.mxu0
        %2101 = vmatpush.bf16.msra.mxu0 %v2070
        %2102 = vmatpush.bf16.msra.mxu0 %v2069
        %2103 = vmatpush.bf16.msra.mxu0 %v2068
        %2104 = vmatpush.bf16.msra.mxu0 %v2067
        %2105 = vmatpush.bf16.msra.mxu0 %v2066
        %2106 = vmatpush.bf16.msra.mxu0 %v2065
        %2107 = vmatpush.bf16.msra.mxu0 %v2064
        %2108 = vmatpush.bf16.msra.mxu0 %v2063
        %2109 = vmatmul.bf16.gmra.mxu0 %v1986
        %v2110 = vpop.f32.mrf.mxu0
        %v2111 = vadd.f32 %v2097, %v2110
        %v2112 = vpop.f32.mrf.mxu0
        %v2113 = vadd.f32 %v2099, %v2112
        %2114 = vdwg.mxu0
        %v2115 = vadd.f32 %v2111, %v1816
        %v2116 = vadd.f32 %v2113, %v1817
        %2117 = vadd.xlane.f32.xlu0 %v2115
        %v2118 = vpop.xlane.xlu0 %2117
        %2119 = vadd.xlane.f32.xlu0 %v2116
        %v2120 = vpop.xlane.xlu0 %2119
        %v2121 = vmul.f32 %v2118, %v1769
        %v2122 = vmul.f32 %v2120, %v1769
        %v2123 = vsub.f32 %v2115, %v2121
        %v2124 = vsub.f32 %v2116, %v2122
        %v2125 = vmul.f32 %v2123, %v2123
        %v2126 = vmul.f32 %v2124, %v2124
        %2127 = vadd.xlane.f32.xlu0 %v2125
        %v2128 = vpop.xlane.xlu0 %2127
        %2129 = vadd.xlane.f32.xlu0 %v2126
        %v2130 = vpop.xlane.xlu0 %2129
        %v2131 = vmul.f32 %v2128, %v1769
        %v2132 = vmul.f32 %v2130, %v1769
        %v2133 = vadd.f32 %v2131, 1e-06
        %v2134 = vadd.f32 %v2132, 1e-06
        %v2135 = vrsqrt.pop %v2133
        %v2136 = vmul.f32 %v2135, %v2133
        %v2137 = vmul.f32 %v2136, %v2135
        %v2138 = vmul.f32 0.5, %v2137
        %v2139 = vsub.f32 1.5, %v2138
        %v2140 = vmul.f32 %v2135, %v2139
        %vm2141 = vweird.f32 %v2133
        %vm2142 = vweird.f32 %v2135
        %vm2143 = vmor %vm2141, %vm2142
        %v2144 = vsel %vm2143, %v2135, %v2140
        %v2145 = vrsqrt.pop %v2134
        %v2146 = vmul.f32 %v2145, %v2134
        %v2147 = vmul.f32 %v2146, %v2145
        %v2148 = vmul.f32 0.5, %v2147
        %v2149 = vsub.f32 1.5, %v2148
        %v2150 = vmul.f32 %v2145, %v2149
        %vm2151 = vweird.f32 %v2134
        %vm2152 = vweird.f32 %v2145
        %vm2153 = vmor %vm2151, %vm2152
        %v2154 = vsel %vm2153, %v2145, %v2150
        %v2155 = vmul.f32 %v2123, %v2144
        %v2156 = vmul.f32 %v2124, %v2154
        %v2157 = vld [vmem:[%s11] sm:$0x1]
        %v2159 = vperm.slane %v2157, 0
        %v2161 = vmul.f32 %v2155, %v2159
        %v2162 = vmul.f32 %v2156, %v2159
        %v2163 = vld [vmem:[%s12] sm:$0x1]
        %v2165 = vperm.slane %v2163, 0
        %v2167 = vadd.f32 %v2161, %v2165
        %v2168 = vadd.f32 %v2162, %v2165
        %2169 = vst [vmem:[%s635] sm:$0xff] %v2167
        %2170 = vst [vmem:[%s635 + $0x8] sm:$0xff] %v2168
        %s2171 = sand.u32 %s347, 1
        %s2172 = scalar_lea.sflag [#allocation5], %s2171
        %s2173 = sand.u32 %s347, 1
        %s2174 = smul.addr %s2173, 16
        %s2175 = scalar_lea.vmem [#allocation15], %s2174
        %s2176 = sand.u32 %s375, 1
        %s2177 = scalar_lea.sflag [#allocation17], %s2176
        %s2178 = sand.u32 %s375, 1
        %s2179 = smul.addr %s2178, 64
        %s2180 = scalar_lea.vmem [#allocation16], %s2179
        // Predicated region
        $region105: #{tpu_custom_call.1} parent=71 // pred_check
          %p2181 = pneg %p357
        $region106: #{tpu_custom_call.1} parent=71 // pred_check_branch
          %2183 = sbr.rel (%p2181) target = $region108
        $region107: #{tpu_custom_call.1} parent=71 // pred_region
          %s2184 = smul.u32 2, %s45
          %2186 = vsyncadd %s2172, 0
          %s2187 = smul.addr %s44, 2
          %s2188 = sadd.s32 %s2184, %s2187
          %s2189 = smul.addr %s2188, 8
          %s2190 = scalar_lea.hbm %s13, %s2189
          %s2191 = sshll.u32 %s2175, 4
          %s2192 = int_to_ptr.vmem [resolvable:$true] %s2191
          %s2193 = sshll.u32 %s2190, 4
          %s2194 = int_to_ptr.hbm [resolvable:$true] %s2193
          %2199 = dma.vmem_to_hbm [thread:$0]  %s2192, 256, %s2194, %s2172, 128, 128, 8
        $region108: #{tpu_custom_call.1} parent=71 // pred_fallthru
          _
        // Predicated region
        $region109: #{tpu_custom_call.1} parent=71 // pred_check
          %p2200 = pneg %p385
        $region110: #{tpu_custom_call.1} parent=71 // pred_check_branch
          %2202 = sbr.rel (%p2200) target = $region112
        $region111: #{tpu_custom_call.1} parent=71 // pred_region
          %s2203 = smul.u32 2, %s45
          %2205 = vsyncadd %s2177, 0
          %s2206 = smul.addr %s44, 8
          %s2207 = sadd.s32 %s2203, %s2206
          %s2208 = smul.addr %s2207, 8
          %s2209 = scalar_lea.hbm %s14, %s2208
          %s2210 = sshll.u32 %s2180, 4
          %s2211 = int_to_ptr.vmem [resolvable:$true] %s2210
          %s2212 = sshll.u32 %s2209, 4
          %s2213 = int_to_ptr.hbm [resolvable:$true] %s2212
          %2218 = dma.vmem_to_hbm [thread:$0]  %s2211, 1024, %s2213, %s2177, 128, 128, 8
        $region112: #{tpu_custom_call.1} parent=71 // pred_fallthru
          _
      $region72: #{tpu_custom_call.1} parent=5 // pred_fallthru
        _
      %p2219 = scmp.le.s32.totalorder 2, %s35
      // Predicated region
      $region113: #{tpu_custom_call.1} parent=5 // pred_check
        %p2220 = pneg %p2219
      $region114: #{tpu_custom_call.1} parent=5 // pred_check_branch
        %2222 = sbr.rel (%p2220) target = $region116
      $region115: #{tpu_custom_call.1} parent=5 // pred_region
        %s2223 = ssub.s32 %s35, 2
        // Predicated region
        $region117: #{tpu_custom_call.1} parent=115 // pred_check
          %p2224 = pneg %p363
        $region118: #{tpu_custom_call.1} parent=115 // pred_check_branch
          %2226 = sbr.rel (%p2224) target = $region120
        $region119: #{tpu_custom_call.1} parent=115 // pred_region
          %s2227 = sand.u32 %s348, 1
          %s2228 = scalar_lea.sflag [#allocation5], %s2227
          %s2229 = sand.u32 %s348, 1
          %s2230 = smul.addr %s2229, 16
          %s2231 = scalar_lea.vmem [#allocation15], %s2230
          %2233 = dma.done %s2228, 256
        $region120: #{tpu_custom_call.1} parent=115 // pred_fallthru
          _
        // Predicated region
        $region121: #{tpu_custom_call.1} parent=115 // pred_check
          %p2234 = pneg %p391
        $region122: #{tpu_custom_call.1} parent=115 // pred_check_branch
          %2236 = sbr.rel (%p2234) target = $region124
        $region123: #{tpu_custom_call.1} parent=115 // pred_region
          %s2237 = sand.u32 %s376, 1
          %s2238 = scalar_lea.sflag [#allocation17], %s2237
          %s2239 = sand.u32 %s376, 1
          %s2240 = smul.addr %s2239, 64
          %s2241 = scalar_lea.vmem [#allocation16], %s2240
          %2243 = dma.done %s2238, 1024
        $region124: #{tpu_custom_call.1} parent=115 // pred_fallthru
          _
      $region116: #{tpu_custom_call.1} parent=5 // pred_fallthru
        _
    $region6: #{tpu_custom_call.1} parent=1 // loop_footer
      %s39 = sadd.s32 1, %s35
    $region7: #{tpu_custom_call.1} parent=1 // loop_footer_branch
      %34 = sbr.rel target = $region3
    $region8: #{tpu_custom_call.1} parent=1 // loop_exit
      _
    %2244 = vsyncpa [#allocation4], 1
    %s2245 = scalar_lea.sflag [#allocation4], 1
    %2246 = vsyncpa %s2245, 1
    %2247 = vsyncpa [#allocation7], 1
    %s2248 = scalar_lea.sflag [#allocation7], 1
    %2249 = vsyncpa %s2248, 1
    %2250 = vsyncpa [#allocation10], 1
    %2251 = vsyncpa [#allocation13], 1
    %2252 = vsyncpa [#allocation5], 1
    %s2253 = scalar_lea.sflag [#allocation5], 1
    %2254 = vsyncpa %s2253, 1
    %2255 = vsyncpa [#allocation17], 1
    %s2256 = scalar_lea.sflag [#allocation17], 1
    %2257 = vsyncpa %s2256, 1

</llo_original>
